<compile_context>
chip_gen: v7x
topology: tpu7x:2x2x1
jax: 0.10.0
libtpu: 0.0.40
codegen_flags: <defaults>
</compile_context>

<pallas_src>
import math

import jax
import jax.numpy as jnp
from jax.experimental import pallas as pl
from jax.experimental.pallas import tpu as pltpu


def _make_kernel(num_heads, head_size, scale, with_probs, compute_dtype,
                 group_members):
    """group_members: tuple of tuples; group g computes the projections listed in
    group_members[g] (0=query, 1=key, 2=value) from activation x_refs[g] using the
    N-fused weight w_refs[g]."""
    all_head = num_heads * head_size
    n_groups = len(group_members)

    def kernel(*refs):
        x_refs = refs[:n_groups]
        w_refs = refs[n_groups:2 * n_groups]
        b_ref = refs[2 * n_groups]
        mask_ref = refs[2 * n_groups + 1]
        ctx_ref = refs[2 * n_groups + 2]
        probs_ref = refs[2 * n_groups + 3] if with_probs else None

        TB, S, _ = x_refs[0].shape
        rows = TB * S

        # ---- Q/K/V projections: one un-padded matmul per distinct activation ----
        proj = [None, None, None]                    # 0=q, 1=k, 2=v  (f32)
        for g, members in enumerate(group_members):
            xg = x_refs[g][...].reshape(rows, -1).astype(compute_dtype)
            wg = w_refs[g][...].astype(compute_dtype)
            og = jnp.dot(xg, wg, preferred_element_type=jnp.float32)
            for idx, j in enumerate(members):
                proj[j] = (og[:, idx * all_head:(idx + 1) * all_head]
                           + b_ref[:, j * all_head:(j + 1) * all_head])

        # Hoisted out of the head loop (no per-head casts / broadcasts):
        #   fold 1/sqrt(d) into Q once, cast MXU operands once, reshape mask once.
        q_c = (proj[0] * scale).reshape(TB, S, all_head).astype(compute_dtype)
        k_c = proj[1].reshape(TB, S, all_head).astype(compute_dtype)
        v_c = proj[2].reshape(TB, S, all_head).astype(compute_dtype)
        mask = mask_ref[...].reshape(TB, 1, S)       # additive, over key positions

        ctx_parts = []
        for h in range(num_heads):                   # small static loop, TB-batched
            lo = h * head_size
            hi = lo + head_size
            # Q @ K^T contracting the LAST axes of both operands (no explicit
            # transpose / XLU vxpose); f32 accumulation on the MXU.
            s = jnp.einsum("bqd,bkd->bqk", q_c[:, :, lo:hi], k_c[:, :, lo:hi],
                           preferred_element_type=jnp.float32)
            s = s + mask

            # Numerically-stable softmax in f32.
            m = jnp.max(s, axis=-1, keepdims=True)
            e = jnp.exp(s - m)
            den = jnp.sum(e, axis=-1, keepdims=True)
            if with_probs:
                p = e / den                          # exact softmax for exported probs
                probs_ref[:, h, :, :] = p.astype(probs_ref.dtype)
            else:
                p = e * pl.reciprocal(den, approx=True)   # EUP slot, nearly free

            # TODO(synk): head_mask (module default None) and train-mode dropout on
            # attention_probs are not applied; this is the eval-mode forward.
            ctx_parts.append(
                jnp.einsum("bqk,bkd->bqd", p.astype(compute_dtype),
                           v_c[:, :, lo:hi],
                           preferred_element_type=jnp.float32))

        # Merge heads in VMEM and do a single lane-dense epilogue store.
        ctx = jnp.concatenate(ctx_parts, axis=-1)    # (TB, S, AH)
        ctx_ref[...] = ctx.astype(ctx_ref.dtype)

    return kernel


def _pick_batch_block(batch, seq, vmem_needed_fn, *, target_rows=1024,
                      vmem_budget=48 << 20):
    """Largest divisor TB of `batch` such that
       - TB*seq stays within ~target_rows (fills MXU/vreg rows, amortizes the
         ~0.35us/grid-step overhead; 1024 rows sized for v5e/v6e's 128 MiB VMEM),
       - the dtype-accurate VMEM footprint (double-buffered blocks + temporaries)
         fits a 48 MiB budget, safe under v7x's 64 MiB physical VMEM, and
       - the grid keeps >= 2 steps whenever batch >= 2, so the "parallel" axis can
         shard across v7x's two TensorCores.
    """
    best = 1
    for tb in range(1, batch + 1):
        if batch % tb:
            continue
        if tb > 1 and tb * seq > target_rows:
            continue
        if batch >= 2 and batch // tb < 2:
            continue
        if vmem_needed_fn(tb) > vmem_budget:
            continue
        best = tb
    return best


def mobilebert_self_attention(query_tensor, key_tensor, value_tensor,
                              wq, bq, wk, bk, wv, bv,
                              attention_mask, num_heads, head_size,
                              *,
                              output_attentions=False,
                              compute_dtype=jnp.bfloat16,
                              probs_dtype=jnp.bfloat16,
                              shared_qkv=None,
                              batch_block=None,
                              target_rows=1024,
                              vmem_budget_bytes=48 << 20):
    """Eval-mode MobileBertSelfAttention.forward.

    Returns context_layer, or (context_layer, attention_probs) when
    output_attentions=True (matching the PyTorch module; head_mask=None, dropout
    in eval mode).

    shared_qkv: True if query/key/value read the same activation (MobileBERT
    bottleneck attention), False if all distinct; None infers by object identity
    (eager mode only -- pass it explicitly under jit/vmap).

    compute_dtype=jnp.bfloat16 (default) feeds the MXU with bf16 operands while
    keeping f32 accumulation and f32 softmax; use jnp.float32 for strict parity.
    """
    B, S, _ = query_tensor.shape
    all_head = num_heads * head_size
    scale = 1.0 / math.sqrt(head_size)
    out_dtype = query_tensor.dtype

    if attention_mask is None:
        attention_mask = jnp.zeros((B, 1, 1, S), jnp.float32)

    # --- group projections by shared activation (layout plumbing, not compute) ---
    tensors = [query_tensor, key_tensor, value_tensor]
    weights = [wq, wk, wv]
    if shared_qkv is True:
        group_ids = [0, 0, 0]
    elif shared_qkv is False:
        group_ids = [0, 1, 2]
    else:
        # Eager-mode convenience only: under jit the tracers for the same logical
        # array are usually distinct objects -- pass shared_qkv explicitly there.
        group_ids, seen = [], []
        for t in tensors:
            for gi, s_ in enumerate(seen):
                if t is s_:
                    group_ids.append(gi)
                    break
            else:
                group_ids.append(len(seen))
                seen.append(t)

    n_groups = max(group_ids) + 1
    group_members = tuple(
        tuple(j for j in range(3) if group_ids[j] == g) for g in range(n_groups))
    x_list = [tensors[m[0]] for m in group_members]
    w_list = [weights[m[0]] if len(m) == 1
              else jnp.concatenate([weights[j] for j in m], axis=1)
              for m in group_members]
    b_cat = jnp.concatenate([bq, bk, bv], axis=0).reshape(1, 3 * all_head)
    in_feats = [x.shape[-1] for x in x_list]

    # --- dtype-accurate VMEM / TB sizing -----------------------------------------
    act_b = jnp.dtype(query_tensor.dtype).itemsize
    w_b = jnp.dtype(wq.dtype).itemsize
    bias_b = jnp.dtype(b_cat.dtype).itemsize
    mask_b = jnp.dtype(attention_mask.dtype).itemsize
    out_b = jnp.dtype(out_dtype).itemsize
    probs_b = jnp.dtype(probs_dtype).itemsize
    comp_b = jnp.dtype(compute_dtype).itemsize

    def vmem_needed(tb):
        rows = tb * S
        # Pipeline blocks (double-buffered by default).  The weight/bias blocks are
        # grid-invariant; TODO(synk): single-buffer them (pipeline_mode=pl.Buffered(1))
        # once buffer_count=1 is reliably supported, freeing VMEM on v7x.
        blk = sum(tb * S * h * act_b for h in in_feats)                       # activations
        blk += sum(h * len(m) * all_head for h, m in zip(in_feats, group_members)) * w_b
        blk += 3 * all_head * bias_b                                          # fused bias
        blk += tb * S * mask_b                                                # mask
        blk += tb * S * all_head * out_b                                      # context out
        if output_attentions:
            blk += tb * num_heads * S * S * probs_b                           # probs out
        # In-kernel temporaries: f32 projections + compute-dtype copies, per-head
        # scores/e/p (f32), per-head ctx parts + merged ctx (f32).
        tmp = rows * 3 * all_head * (4 + comp_b)
        tmp += 3 * tb * S * S * 4
        tmp += 2 * tb * S * all_head * 4
        return 2 * blk + tmp

    if batch_block is not None:
        TB = batch_block
    else:
        TB = _pick_batch_block(B, S, vmem_needed, target_rows=target_rows,
                               vmem_budget=vmem_budget_bytes)
    assert B % TB == 0, "batch_block must divide the batch size"
    grid = (B // TB,)

    vmem_bytes = vmem_needed(TB)
    vmem_limit = None
    if vmem_bytes > (32 << 20):
        # Raise the scoped limit only when needed, and leave headroom below v7x's
        # 64 MiB physical VMEM.
        vmem_limit = int(min(vmem_bytes + (4 << 20), 48 << 20))

    # --- specs ---------------------------------------------------------------------
    in_specs = []
    for x in x_list:
        hf = x.shape[-1]
        in_specs.append(pl.BlockSpec((TB, S, hf), lambda b: (b, 0, 0)))
    for w in w_list:
        in_specs.append(pl.BlockSpec(w.shape, lambda b: (0, 0)))   # resident weight
    in_specs.append(pl.BlockSpec((1, 3 * all_head), lambda b: (0, 0)))          # bias
    in_specs.append(pl.BlockSpec((TB, 1, 1, S), lambda b: (b, 0, 0, 0)))        # mask

    out_shapes = [jax.ShapeDtypeStruct((B, S, all_head), out_dtype)]
    out_specs = [pl.BlockSpec((TB, S, all_head), lambda b: (b, 0, 0))]
    if output_attentions:
        out_shapes.append(jax.ShapeDtypeStruct((B, num_heads, S, S), probs_dtype))
        out_specs.append(pl.BlockSpec((TB, num_heads, S, S),
                                      lambda b: (b, 0, 0, 0)))

    # Advisory cost estimate with dtype-accurate byte counts.
    proj_flops = 2 * B * S * all_head * sum(
        h * len(m) for h, m in zip(in_feats, group_members))
    attn_flops = 4 * B * num_heads * S * S * head_size
    bytes_accessed = (B * S * sum(in_feats) * act_b
                      + sum(h * len(m) * all_head
                            for h, m in zip(in_feats, group_members)) * w_b
                      + 3 * all_head * bias_b
                      + B * S * mask_b
                      + B * S * all_head * out_b
                      + (B * num_heads * S * S * probs_b if output_attentions else 0))
    cost = pl.CostEstimate(flops=int(proj_flops + attn_flops),
                           transcendentals=int(B * num_heads * S * S),
                           bytes_accessed=int(bytes_accessed))

    fn = pl.pallas_call(
        _make_kernel(num_heads, head_size, scale, output_attentions,
                     compute_dtype, group_members),
        out_shape=tuple(out_shapes),
        grid_spec=pltpu.PrefetchScalarGridSpec(
            num_scalar_prefetch=0,
            grid=grid,
            in_specs=in_specs,
            out_specs=list(out_specs)),
        compiler_params=pltpu.CompilerParams(
            dimension_semantics=("parallel",),
            vmem_limit_bytes=vmem_limit),
        cost_estimate=cost,
    )
    outs = fn(*x_list, *w_list, b_cat, attention_mask)
    if output_attentions:
        return outs[0], outs[1]
    return outs[0]


def reference_attention(q, k, v, wq, bq, wk, bk, wv, bv, mask, nh, hd):
    """Pure-JAX reference mirroring the PyTorch forward (eval mode)."""
    B, S, _ = q.shape
    mq = q @ wq + bq
    mk = k @ wk + bk
    mv = v @ wv + bv

    def split(x):  # (B, S, nh*hd) -> (B, nh, S, hd)
        return x.reshape(B, S, nh, hd).transpose(0, 2, 1, 3)

    ql, kl, vl = split(mq), split(mk), split(mv)
    scores = jnp.einsum("bhqd,bhkd->bhqk", ql, kl) / math.sqrt(hd)
    scores = scores + mask  # (B,1,1,S) broadcast
    probs = jax.nn.softmax(scores, axis=-1)
    ctx = jnp.einsum("bhqk,bhkd->bhqd", probs, vl)
    ctx = ctx.transpose(0, 2, 1, 3).reshape(B, S, nh * hd)
    return ctx, probs


if __name__ == "__main__":
    # Small config consistent with the module:
    #   true_hidden_size = 32, intra_bottleneck_size = 32,
    #   num_attention_heads = 4 -> attention_head_size = 8,
    #   use_bottleneck_attention = True.
    B, S = 2, 8
    true_hidden = 32
    intra_bottleneck = 32
    num_heads = 4
    head_size = intra_bottleneck // num_heads
    all_head = num_heads * head_size

    key0 = jax.random.PRNGKey(0)
    ks = jax.random.split(key0, 10)

    query_tensor = jax.random.normal(ks[0], (B, S, true_hidden), jnp.float32)
    key_tensor = jax.random.normal(ks[1], (B, S, true_hidden), jnp.float32)
    value_tensor = jax.random.normal(ks[2], (B, S, true_hidden), jnp.float32)

    wq = jax.random.normal(ks[3], (true_hidden, all_head), jnp.float32) * 0.05
    bq = jax.random.normal(ks[4], (all_head,), jnp.float32) * 0.01
    wk = jax.random.normal(ks[5], (true_hidden, all_head), jnp.float32) * 0.05
    bk = jax.random.normal(ks[6], (all_head,), jnp.float32) * 0.01
    wv = jax.random.normal(ks[7], (true_hidden, all_head), jnp.float32) * 0.05
    bv = jax.random.normal(ks[8], (all_head,), jnp.float32) * 0.01

    # Additive attention mask (B, 1, 1, S): mask the last key position of batch 1.
    mask = jnp.zeros((B, 1, 1, S), jnp.float32)
    mask = mask.at[1, 0, 0, -1].set(-10000.0)

    # ---- 1) strict parity: distinct q/k/v activations, f32 compute, exact probs --
    ctx, probs = mobilebert_self_attention(
        query_tensor, key_tensor, value_tensor,
        wq, bq, wk, bk, wv, bv, mask, num_heads, head_size,
        output_attentions=True, compute_dtype=jnp.float32,
        probs_dtype=jnp.float32, shared_qkv=False)
    ctx = jax.block_until_ready(ctx)
    probs = jax.block_until_ready(probs)

    ref_ctx, ref_probs = reference_attention(
        query_tensor, key_tensor, value_tensor,
        wq, bq, wk, bk, wv, bv, mask, num_heads, head_size)

    assert ctx.shape == (B, S, all_head)
    assert probs.shape == (B, num_heads, S, S)
    assert jnp.allclose(ctx, ref_ctx, atol=2e-3, rtol=2e-3)
    assert jnp.allclose(probs, ref_probs, atol=2e-3, rtol=2e-3)

    # ---- 2) fast path: shared activation (bottleneck attention), default bf16 ----
    ctx_s, probs_s = mobilebert_self_attention(
        query_tensor, query_tensor, query_tensor,
        wq, bq, wk, bk, wv, bv, mask, num_heads, head_size,
        output_attentions=True, shared_qkv=True)   # bf16 MXU operands + bf16 probs
    ctx_s = jax.block_until_ready(ctx_s)
    probs_s = jax.block_until_ready(probs_s)
    ref_ctx_s, ref_probs_s = reference_attention(
        query_tensor, query_tensor, query_tensor,
        wq, bq, wk, bk, wv, bv, mask, num_heads, head_size)
    assert jnp.allclose(ctx_s.astype(jnp.float32), ref_ctx_s, atol=3e-2, rtol=3e-2)
    assert jnp.allclose(probs_s.astype(jnp.float32), ref_probs_s, atol=2e-2, rtol=2e-2)

    # ---- 3) default call: context only (approx EUP reciprocal in the softmax) ----
    ctx_d = mobilebert_self_attention(
        query_tensor, query_tensor, query_tensor,
        wq, bq, wk, bk, wv, bv, mask, num_heads, head_size, shared_qkv=True)
    ctx_d = jax.block_until_ready(ctx_d)
    assert ctx_d.shape == (B, S, all_head)
    assert jnp.allclose(ctx_d.astype(jnp.float32), ref_ctx_s, atol=3e-2, rtol=3e-2)

    print("KERNEL_OK")
</pallas_src>

<mosaic_0001>
module attributes {stable_mosaic.version = 11 : i64} {
  func.func @kernel(%arg0: i32, %arg1: memref<1x8x32xf32, #tpu.memory_space<vmem>>, %arg2: memref<1x8x32xf32, #tpu.memory_space<vmem>>, %arg3: memref<1x8x32xf32, #tpu.memory_space<vmem>>, %arg4: memref<32x32xf32, #tpu.memory_space<vmem>>, %arg5: memref<32x32xf32, #tpu.memory_space<vmem>>, %arg6: memref<32x32xf32, #tpu.memory_space<vmem>>, %arg7: memref<1x96xf32, #tpu.memory_space<vmem>>, %arg8: memref<1x1x1x8xf32, #tpu.memory_space<vmem>>, %arg9: memref<1x8x32xf32, #tpu.memory_space<vmem>>, %arg10: memref<1x4x8x8xf32, #tpu.memory_space<vmem>>) attributes {dimension_semantics = [#tpu.dimension_semantics<parallel>], iteration_bounds = array<i64: 2>, scalar_prefetch = 0 : i64, scratch_operands = 0 : i64, tpu.core_type = #tpu.core_type<tc>, window_params = [{transform_indices = @transform_0, window_bounds = array<i64: 1, 8, 32>}, {transform_indices = @transform_1, window_bounds = array<i64: 1, 8, 32>}, {transform_indices = @transform_2, window_bounds = array<i64: 1, 8, 32>}, {pipeline_mode = #tpu.pipeline_mode<synchronous>, transform_indices = @transform_3, window_bounds = array<i64: 32, 32>}, {pipeline_mode = #tpu.pipeline_mode<synchronous>, transform_indices = @transform_4, window_bounds = array<i64: 32, 32>}, {pipeline_mode = #tpu.pipeline_mode<synchronous>, transform_indices = @transform_5, window_bounds = array<i64: 32, 32>}, {pipeline_mode = #tpu.pipeline_mode<synchronous>, transform_indices = @transform_6, window_bounds = array<i64: 1, 96>}, {transform_indices = @transform_7, window_bounds = array<i64: 1, 1, 1, 8>}, {transform_indices = @transform_8, window_bounds = array<i64: 1, 8, 32>}, {transform_indices = @transform_9, window_bounds = array<i64: 1, 4, 8, 8>}]} {
    %c0 = arith.constant 0 : index
    %c0_0 = arith.constant 0 : index
    %c0_1 = arith.constant 0 : index
    %0 = vector.load %arg1[%c0, %c0_0, %c0_1] : memref<1x8x32xf32, #tpu.memory_space<vmem>>, vector<1x8x32xf32>
    %1 = vector.shape_cast %0 : vector<1x8x32xf32> to vector<8x32xf32>
    %c0_2 = arith.constant 0 : index
    %c0_3 = arith.constant 0 : index
    %2 = vector.load %arg4[%c0_2, %c0_3] : memref<32x32xf32, #tpu.memory_space<vmem>>, vector<32x32xf32>
    %cst = arith.constant dense<0.000000e+00> : vector<8x32xf32>
    %3 = tpu.matmul %1, %2, %cst {dimension_numbers = #tpu.dot_dimension_numbers<[1], [0], [0], [1], [0, 0, 1, 1], [], []>} : vector<8x32xf32>, vector<32x32xf32>, vector<8x32xf32> -> vector<8x32xf32>
    %c0_4 = arith.constant 0 : index
    %c0_5 = arith.constant 0 : index
    %4 = vector.load %arg7[%c0_4, %c0_5] : memref<1x96xf32, #tpu.memory_space<vmem>>, vector<1x32xf32>
    %5 = vector.broadcast %4 : vector<1x32xf32> to vector<8x32xf32>
    %6 = arith.addf %3, %5 : vector<8x32xf32>
    %c0_6 = arith.constant 0 : index
    %c0_7 = arith.constant 0 : index
    %c0_8 = arith.constant 0 : index
    %7 = vector.load %arg2[%c0_6, %c0_7, %c0_8] : memref<1x8x32xf32, #tpu.memory_space<vmem>>, vector<1x8x32xf32>
    %8 = vector.shape_cast %7 : vector<1x8x32xf32> to vector<8x32xf32>
    %c0_9 = arith.constant 0 : index
    %c0_10 = arith.constant 0 : index
    %9 = vector.load %arg5[%c0_9, %c0_10] : memref<32x32xf32, #tpu.memory_space<vmem>>, vector<32x32xf32>
    %cst_11 = arith.constant dense<0.000000e+00> : vector<8x32xf32>
    %10 = tpu.matmul %8, %9, %cst_11 {dimension_numbers = #tpu.dot_dimension_numbers<[1], [0], [0], [1], [0, 0, 1, 1], [], []>} : vector<8x32xf32>, vector<32x32xf32>, vector<8x32xf32> -> vector<8x32xf32>
    %c0_12 = arith.constant 0 : index
    %c32 = arith.constant 32 : index
    %11 = vector.load %arg7[%c0_12, %c32] : memref<1x96xf32, #tpu.memory_space<vmem>>, vector<1x32xf32>
    %12 = vector.broadcast %11 : vector<1x32xf32> to vector<8x32xf32>
    %13 = arith.addf %10, %12 : vector<8x32xf32>
    %c0_13 = arith.constant 0 : index
    %c0_14 = arith.constant 0 : index
    %c0_15 = arith.constant 0 : index
    %14 = vector.load %arg3[%c0_13, %c0_14, %c0_15] : memref<1x8x32xf32, #tpu.memory_space<vmem>>, vector<1x8x32xf32>
    %15 = vector.shape_cast %14 : vector<1x8x32xf32> to vector<8x32xf32>
    %c0_16 = arith.constant 0 : index
    %c0_17 = arith.constant 0 : index
    %16 = vector.load %arg6[%c0_16, %c0_17] : memref<32x32xf32, #tpu.memory_space<vmem>>, vector<32x32xf32>
    %cst_18 = arith.constant dense<0.000000e+00> : vector<8x32xf32>
    %17 = tpu.matmul %15, %16, %cst_18 {dimension_numbers = #tpu.dot_dimension_numbers<[1], [0], [0], [1], [0, 0, 1, 1], [], []>} : vector<8x32xf32>, vector<32x32xf32>, vector<8x32xf32> -> vector<8x32xf32>
    %c0_19 = arith.constant 0 : index
    %c64 = arith.constant 64 : index
    %18 = vector.load %arg7[%c0_19, %c64] : memref<1x96xf32, #tpu.memory_space<vmem>>, vector<1x32xf32>
    %19 = vector.broadcast %18 : vector<1x32xf32> to vector<8x32xf32>
    %20 = arith.addf %17, %19 : vector<8x32xf32>
    %cst_20 = arith.constant 0.353553385 : f32
    %21 = vector.broadcast %cst_20 : f32 to vector<8x32xf32>
    %22 = arith.mulf %6, %21 : vector<8x32xf32>
    %23 = vector.shape_cast %22 : vector<8x32xf32> to vector<1x8x32xf32>
    %24 = vector.shape_cast %13 : vector<8x32xf32> to vector<1x8x32xf32>
    %25 = vector.shape_cast %20 : vector<8x32xf32> to vector<1x8x32xf32>
    %c0_21 = arith.constant 0 : index
    %c0_22 = arith.constant 0 : index
    %c0_23 = arith.constant 0 : index
    %c0_24 = arith.constant 0 : index
    %26 = vector.load %arg8[%c0_21, %c0_22, %c0_23, %c0_24] : memref<1x1x1x8xf32, #tpu.memory_space<vmem>>, vector<1x1x1x8xf32>
    %27 = vector.shape_cast %26 : vector<1x1x1x8xf32> to vector<1x1x8xf32>
    %28 = vector.extract_strided_slice %23 {offsets = [0, 0, 0], sizes = [1, 8, 8], strides = [1, 1, 1]} : vector<1x8x32xf32> to vector<1x8x8xf32>
    %29 = vector.extract_strided_slice %24 {offsets = [0, 0, 0], sizes = [1, 8, 8], strides = [1, 1, 1]} : vector<1x8x32xf32> to vector<1x8x8xf32>
    "tpu.trace_start"() <{level = 10 : i32, message = "bqd,bkd->bqk"}> : () -> ()
    %cst_25 = arith.constant dense<0.000000e+00> : vector<1x8x8xf32>
    %30 = tpu.matmul %28, %29, %cst_25 {dimension_numbers = #tpu.dot_dimension_numbers<[2], [2], [1], [1], [0, 0, 0, 1, 1, 1], [0], [0]>} : vector<1x8x8xf32>, vector<1x8x8xf32>, vector<1x8x8xf32> -> vector<1x8x8xf32>
    "tpu.trace_stop"() : () -> ()
    %31 = vector.broadcast %27 : vector<1x1x8xf32> to vector<1x8x8xf32>
    %32 = arith.addf %30, %31 : vector<1x8x8xf32>
    %cst_26 = arith.constant dense<0xFF800000> : vector<1x8xf32>
    %33 = vector.multi_reduction <maximumf>, %32, %cst_26 [2] : vector<1x8x8xf32> to vector<1x8xf32>
    %34 = vector.shape_cast %33 : vector<1x8xf32> to vector<1x8x1xf32>
    %35 = vector.broadcast %34 : vector<1x8x1xf32> to vector<1x8x8xf32>
    %36 = arith.subf %32, %35 : vector<1x8x8xf32>
    %37 = math.exp %36 : vector<1x8x8xf32>
    %cst_27 = arith.constant dense<0.000000e+00> : vector<1x8xf32>
    %38 = vector.multi_reduction <add>, %37, %cst_27 [2] : vector<1x8x8xf32> to vector<1x8xf32>
    %39 = vector.shape_cast %38 : vector<1x8xf32> to vector<1x8x1xf32>
    %40 = vector.broadcast %39 : vector<1x8x1xf32> to vector<1x8x8xf32>
    %41 = arith.divf %37, %40 : vector<1x8x8xf32>
    %c0_28 = arith.constant 0 : index
    %c0_29 = arith.constant 0 : index
    %c0_30 = arith.constant 0 : index
    %c0_31 = arith.constant 0 : index
    %42 = vector.load %arg10[%c0_28, %c0_29, %c0_30, %c0_31] : memref<1x4x8x8xf32, #tpu.memory_space<vmem>>, vector<1x1x8x8xf32>
    %43 = vector.shape_cast %42 : vector<1x1x8x8xf32> to vector<1x8x8xf32>
    %44 = vector.shape_cast %41 : vector<1x8x8xf32> to vector<1x1x8x8xf32>
    tpu.vector_store %arg10[%c0_28, %c0_29, %c0_30, %c0_31], %44 {strides = array<i32>} : memref<1x4x8x8xf32, #tpu.memory_space<vmem>>, vector<1x1x8x8xf32>,
    %45 = vector.extract_strided_slice %25 {offsets = [0, 0, 0], sizes = [1, 8, 8], strides = [1, 1, 1]} : vector<1x8x32xf32> to vector<1x8x8xf32>
    "tpu.trace_start"() <{level = 10 : i32, message = "bqk,bkd->bqd"}> : () -> ()
    %cst_32 = arith.constant dense<0.000000e+00> : vector<1x8x8xf32>
    %46 = tpu.matmul %41, %45, %cst_32 {dimension_numbers = #tpu.dot_dimension_numbers<[2], [1], [1], [2], [0, 0, 0, 1, 1, 2], [0], [0]>} : vector<1x8x8xf32>, vector<1x8x8xf32>, vector<1x8x8xf32> -> vector<1x8x8xf32>
    "tpu.trace_stop"() : () -> ()
    %47 = vector.extract_strided_slice %23 {offsets = [0, 0, 8], sizes = [1, 8, 8], strides = [1, 1, 1]} : vector<1x8x32xf32> to vector<1x8x8xf32>
    %48 = vector.extract_strided_slice %24 {offsets = [0, 0, 8], sizes = [1, 8, 8], strides = [1, 1, 1]} : vector<1x8x32xf32> to vector<1x8x8xf32>
    "tpu.trace_start"() <{level = 10 : i32, message = "bqd,bkd->bqk"}> : () -> ()
    %cst_33 = arith.constant dense<0.000000e+00> : vector<1x8x8xf32>
    %49 = tpu.matmul %47, %48, %cst_33 {dimension_numbers = #tpu.dot_dimension_numbers<[2], [2], [1], [1], [0, 0, 0, 1, 1, 1], [0], [0]>} : vector<1x8x8xf32>, vector<1x8x8xf32>, vector<1x8x8xf32> -> vector<1x8x8xf32>
    "tpu.trace_stop"() : () -> ()
    %50 = vector.broadcast %27 : vector<1x1x8xf32> to vector<1x8x8xf32>
    %51 = arith.addf %49, %50 : vector<1x8x8xf32>
    %cst_34 = arith.constant dense<0xFF800000> : vector<1x8xf32>
    %52 = vector.multi_reduction <maximumf>, %51, %cst_34 [2] : vector<1x8x8xf32> to vector<1x8xf32>
    %53 = vector.shape_cast %52 : vector<1x8xf32> to vector<1x8x1xf32>
    %54 = vector.broadcast %53 : vector<1x8x1xf32> to vector<1x8x8xf32>
    %55 = arith.subf %51, %54 : vector<1x8x8xf32>
    %56 = math.exp %55 : vector<1x8x8xf32>
    %cst_35 = arith.constant dense<0.000000e+00> : vector<1x8xf32>
    %57 = vector.multi_reduction <add>, %56, %cst_35 [2] : vector<1x8x8xf32> to vector<1x8xf32>
    %58 = vector.shape_cast %57 : vector<1x8xf32> to vector<1x8x1xf32>
    %59 = vector.broadcast %58 : vector<1x8x1xf32> to vector<1x8x8xf32>
    %60 = arith.divf %56, %59 : vector<1x8x8xf32>
    %c0_36 = arith.constant 0 : index
    %c1 = arith.constant 1 : index
    %c0_37 = arith.constant 0 : index
    %c0_38 = arith.constant 0 : index
    %61 = vector.load %arg10[%c0_36, %c1, %c0_37, %c0_38] : memref<1x4x8x8xf32, #tpu.memory_space<vmem>>, vector<1x1x8x8xf32>
    %62 = vector.shape_cast %61 : vector<1x1x8x8xf32> to vector<1x8x8xf32>
    %63 = vector.shape_cast %60 : vector<1x8x8xf32> to vector<1x1x8x8xf32>
    tpu.vector_store %arg10[%c0_36, %c1, %c0_37, %c0_38], %63 {strides = array<i32>} : memref<1x4x8x8xf32, #tpu.memory_space<vmem>>, vector<1x1x8x8xf32>,
    %64 = vector.extract_strided_slice %25 {offsets = [0, 0, 8], sizes = [1, 8, 8], strides = [1, 1, 1]} : vector<1x8x32xf32> to vector<1x8x8xf32>
    "tpu.trace_start"() <{level = 10 : i32, message = "bqk,bkd->bqd"}> : () -> ()
    %cst_39 = arith.constant dense<0.000000e+00> : vector<1x8x8xf32>
    %65 = tpu.matmul %60, %64, %cst_39 {dimension_numbers = #tpu.dot_dimension_numbers<[2], [1], [1], [2], [0, 0, 0, 1, 1, 2], [0], [0]>} : vector<1x8x8xf32>, vector<1x8x8xf32>, vector<1x8x8xf32> -> vector<1x8x8xf32>
    "tpu.trace_stop"() : () -> ()
    %66 = vector.extract_strided_slice %23 {offsets = [0, 0, 16], sizes = [1, 8, 8], strides = [1, 1, 1]} : vector<1x8x32xf32> to vector<1x8x8xf32>
    %67 = vector.extract_strided_slice %24 {offsets = [0, 0, 16], sizes = [1, 8, 8], strides = [1, 1, 1]} : vector<1x8x32xf32> to vector<1x8x8xf32>
    "tpu.trace_start"() <{level = 10 : i32, message = "bqd,bkd->bqk"}> : () -> ()
    %cst_40 = arith.constant dense<0.000000e+00> : vector<1x8x8xf32>
    %68 = tpu.matmul %66, %67, %cst_40 {dimension_numbers = #tpu.dot_dimension_numbers<[2], [2], [1], [1], [0, 0, 0, 1, 1, 1], [0], [0]>} : vector<1x8x8xf32>, vector<1x8x8xf32>, vector<1x8x8xf32> -> vector<1x8x8xf32>
    "tpu.trace_stop"() : () -> ()
    %69 = vector.broadcast %27 : vector<1x1x8xf32> to vector<1x8x8xf32>
    %70 = arith.addf %68, %69 : vector<1x8x8xf32>
    %cst_41 = arith.constant dense<0xFF800000> : vector<1x8xf32>
    %71 = vector.multi_reduction <maximumf>, %70, %cst_41 [2] : vector<1x8x8xf32> to vector<1x8xf32>
    %72 = vector.shape_cast %71 : vector<1x8xf32> to vector<1x8x1xf32>
    %73 = vector.broadcast %72 : vector<1x8x1xf32> to vector<1x8x8xf32>
    %74 = arith.subf %70, %73 : vector<1x8x8xf32>
    %75 = math.exp %74 : vector<1x8x8xf32>
    %cst_42 = arith.constant dense<0.000000e+00> : vector<1x8xf32>
    %76 = vector.multi_reduction <add>, %75, %cst_42 [2] : vector<1x8x8xf32> to vector<1x8xf32>
    %77 = vector.shape_cast %76 : vector<1x8xf32> to vector<1x8x1xf32>
    %78 = vector.broadcast %77 : vector<1x8x1xf32> to vector<1x8x8xf32>
    %79 = arith.divf %75, %78 : vector<1x8x8xf32>
    %c0_43 = arith.constant 0 : index
    %c2 = arith.constant 2 : index
    %c0_44 = arith.constant 0 : index
    %c0_45 = arith.constant 0 : index
    %80 = vector.load %arg10[%c0_43, %c2, %c0_44, %c0_45] : memref<1x4x8x8xf32, #tpu.memory_space<vmem>>, vector<1x1x8x8xf32>
    %81 = vector.shape_cast %80 : vector<1x1x8x8xf32> to vector<1x8x8xf32>
    %82 = vector.shape_cast %79 : vector<1x8x8xf32> to vector<1x1x8x8xf32>
    tpu.vector_store %arg10[%c0_43, %c2, %c0_44, %c0_45], %82 {strides = array<i32>} : memref<1x4x8x8xf32, #tpu.memory_space<vmem>>, vector<1x1x8x8xf32>,
    %83 = vector.extract_strided_slice %25 {offsets = [0, 0, 16], sizes = [1, 8, 8], strides = [1, 1, 1]} : vector<1x8x32xf32> to vector<1x8x8xf32>
    "tpu.trace_start"() <{level = 10 : i32, message = "bqk,bkd->bqd"}> : () -> ()
    %cst_46 = arith.constant dense<0.000000e+00> : vector<1x8x8xf32>
    %84 = tpu.matmul %79, %83, %cst_46 {dimension_numbers = #tpu.dot_dimension_numbers<[2], [1], [1], [2], [0, 0, 0, 1, 1, 2], [0], [0]>} : vector<1x8x8xf32>, vector<1x8x8xf32>, vector<1x8x8xf32> -> vector<1x8x8xf32>
    "tpu.trace_stop"() : () -> ()
    %85 = vector.extract_strided_slice %23 {offsets = [0, 0, 24], sizes = [1, 8, 8], strides = [1, 1, 1]} : vector<1x8x32xf32> to vector<1x8x8xf32>
    %86 = vector.extract_strided_slice %24 {offsets = [0, 0, 24], sizes = [1, 8, 8], strides = [1, 1, 1]} : vector<1x8x32xf32> to vector<1x8x8xf32>
    "tpu.trace_start"() <{level = 10 : i32, message = "bqd,bkd->bqk"}> : () -> ()
    %cst_47 = arith.constant dense<0.000000e+00> : vector<1x8x8xf32>
    %87 = tpu.matmul %85, %86, %cst_47 {dimension_numbers = #tpu.dot_dimension_numbers<[2], [2], [1], [1], [0, 0, 0, 1, 1, 1], [0], [0]>} : vector<1x8x8xf32>, vector<1x8x8xf32>, vector<1x8x8xf32> -> vector<1x8x8xf32>
    "tpu.trace_stop"() : () -> ()
    %88 = vector.broadcast %27 : vector<1x1x8xf32> to vector<1x8x8xf32>
    %89 = arith.addf %87, %88 : vector<1x8x8xf32>
    %cst_48 = arith.constant dense<0xFF800000> : vector<1x8xf32>
    %90 = vector.multi_reduction <maximumf>, %89, %cst_48 [2] : vector<1x8x8xf32> to vector<1x8xf32>
    %91 = vector.shape_cast %90 : vector<1x8xf32> to vector<1x8x1xf32>
    %92 = vector.broadcast %91 : vector<1x8x1xf32> to vector<1x8x8xf32>
    %93 = arith.subf %89, %92 : vector<1x8x8xf32>
    %94 = math.exp %93 : vector<1x8x8xf32>
    %cst_49 = arith.constant dense<0.000000e+00> : vector<1x8xf32>
    %95 = vector.multi_reduction <add>, %94, %cst_49 [2] : vector<1x8x8xf32> to vector<1x8xf32>
    %96 = vector.shape_cast %95 : vector<1x8xf32> to vector<1x8x1xf32>
    %97 = vector.broadcast %96 : vector<1x8x1xf32> to vector<1x8x8xf32>
    %98 = arith.divf %94, %97 : vector<1x8x8xf32>
    %c0_50 = arith.constant 0 : index
    %c3 = arith.constant 3 : index
    %c0_51 = arith.constant 0 : index
    %c0_52 = arith.constant 0 : index
    %99 = vector.load %arg10[%c0_50, %c3, %c0_51, %c0_52] : memref<1x4x8x8xf32, #tpu.memory_space<vmem>>, vector<1x1x8x8xf32>
    %100 = vector.shape_cast %99 : vector<1x1x8x8xf32> to vector<1x8x8xf32>
    %101 = vector.shape_cast %98 : vector<1x8x8xf32> to vector<1x1x8x8xf32>
    tpu.vector_store %arg10[%c0_50, %c3, %c0_51, %c0_52], %101 {strides = array<i32>} : memref<1x4x8x8xf32, #tpu.memory_space<vmem>>, vector<1x1x8x8xf32>,
    %102 = vector.extract_strided_slice %25 {offsets = [0, 0, 24], sizes = [1, 8, 8], strides = [1, 1, 1]} : vector<1x8x32xf32> to vector<1x8x8xf32>
    "tpu.trace_start"() <{level = 10 : i32, message = "bqk,bkd->bqd"}> : () -> ()
    %cst_53 = arith.constant dense<0.000000e+00> : vector<1x8x8xf32>
    %103 = tpu.matmul %98, %102, %cst_53 {dimension_numbers = #tpu.dot_dimension_numbers<[2], [1], [1], [2], [0, 0, 0, 1, 1, 2], [0], [0]>} : vector<1x8x8xf32>, vector<1x8x8xf32>, vector<1x8x8xf32> -> vector<1x8x8xf32>
    "tpu.trace_stop"() : () -> ()
    %104 = tpu.concatenate %46, %65, %84, %103 in 2 : vector<1x8x8xf32>, vector<1x8x8xf32>, vector<1x8x8xf32>, vector<1x8x8xf32> -> vector<1x8x32xf32>
    %c0_54 = arith.constant 0 : index
    %c0_55 = arith.constant 0 : index
    %c0_56 = arith.constant 0 : index
    %105 = vector.load %arg9[%c0_54, %c0_55, %c0_56] : memref<1x8x32xf32, #tpu.memory_space<vmem>>, vector<1x8x32xf32>
    tpu.vector_store %arg9[%c0_54, %c0_55, %c0_56], %104 {strides = array<i32>} : memref<1x8x32xf32, #tpu.memory_space<vmem>>, vector<1x8x32xf32>,
    return
  }
  func.func @transform_0(%arg0: i32) -> (i32, i32, i32) {
    %c0_i32 = arith.constant 0 : i32
    %c0_i32_0 = arith.constant 0 : i32
    %c0_i32_1 = arith.constant 0 : i32
    return %arg0, %c0_i32, %c0_i32_0 : i32, i32, i32
  }
  func.func @transform_1(%arg0: i32) -> (i32, i32, i32) {
    %c0_i32 = arith.constant 0 : i32
    %c0_i32_0 = arith.constant 0 : i32
    %c0_i32_1 = arith.constant 0 : i32
    return %arg0, %c0_i32, %c0_i32_0 : i32, i32, i32
  }
  func.func @transform_2(%arg0: i32) -> (i32, i32, i32) {
    %c0_i32 = arith.constant 0 : i32
    %c0_i32_0 = arith.constant 0 : i32
    %c0_i32_1 = arith.constant 0 : i32
    return %arg0, %c0_i32, %c0_i32_0 : i32, i32, i32
  }
  func.func @transform_3(%arg0: i32) -> (i32, i32) {
    %c0_i32 = arith.constant 0 : i32
    %c0_i32_0 = arith.constant 0 : i32
    %c0_i32_1 = arith.constant 0 : i32
    return %c0_i32, %c0_i32_0 : i32, i32
  }
  func.func @transform_4(%arg0: i32) -> (i32, i32) {
    %c0_i32 = arith.constant 0 : i32
    %c0_i32_0 = arith.constant 0 : i32
    %c0_i32_1 = arith.constant 0 : i32
    return %c0_i32, %c0_i32_0 : i32, i32
  }
  func.func @transform_5(%arg0: i32) -> (i32, i32) {
    %c0_i32 = arith.constant 0 : i32
    %c0_i32_0 = arith.constant 0 : i32
    %c0_i32_1 = arith.constant 0 : i32
    return %c0_i32, %c0_i32_0 : i32, i32
  }
  func.func @transform_6(%arg0: i32) -> (i32, i32) {
    %c0_i32 = arith.constant 0 : i32
    %c0_i32_0 = arith.constant 0 : i32
    %c0_i32_1 = arith.constant 0 : i32
    return %c0_i32, %c0_i32_0 : i32, i32
  }
  func.func @transform_7(%arg0: i32) -> (i32, i32, i32, i32) {
    %c0_i32 = arith.constant 0 : i32
    %c0_i32_0 = arith.constant 0 : i32
    %c0_i32_1 = arith.constant 0 : i32
    %c0_i32_2 = arith.constant 0 : i32
    return %arg0, %c0_i32, %c0_i32_0, %c0_i32_1 : i32, i32, i32, i32
  }
  func.func @transform_8(%arg0: i32) -> (i32, i32, i32) {
    %c0_i32 = arith.constant 0 : i32
    %c0_i32_0 = arith.constant 0 : i32
    %c0_i32_1 = arith.constant 0 : i32
    return %arg0, %c0_i32, %c0_i32_0 : i32, i32, i32
  }
  func.func @transform_9(%arg0: i32) -> (i32, i32, i32, i32) {
    %c0_i32 = arith.constant 0 : i32
    %c0_i32_0 = arith.constant 0 : i32
    %c0_i32_1 = arith.constant 0 : i32
    %c0_i32_2 = arith.constant 0 : i32
    return %arg0, %c0_i32, %c0_i32_0, %c0_i32_1 : i32, i32, i32, i32
  }
}

</mosaic_0001>

<llo_original>
// kernel: tpu_custom_call.1
$region0: #{tpu_custom_call.1}
  #allocation0 [shape = 'u32[]', space=smem, size = 0x4, offset = 0x4, fixed_abs, tag = 'smem constant byte address 0x4 - core index']
  #allocation1 [shape = 'u32[144,128]{1,0:T(1,128)}', space=vmem, size = 0x12000, scoped, tag = 'internal scratch']
  %s0 = inlined_call_operand.hbm [shape: f32[2,8,32], index: 0, kind: input, shape index: {}]
  %s1 = inlined_call_operand.hbm [shape: f32[2,8,32], index: 1, kind: input, shape index: {}]
  %s2 = inlined_call_operand.hbm [shape: f32[2,8,32], index: 2, kind: input, shape index: {}]
  %s3 = inlined_call_operand.hbm [shape: f32[32,32], index: 3, kind: input, shape index: {}]
  %s4 = inlined_call_operand.hbm [shape: f32[32,32], index: 4, kind: input, shape index: {}]
  %s5 = inlined_call_operand.hbm [shape: f32[32,32], index: 5, kind: input, shape index: {}]
  %s6 = inlined_call_operand.vmem [shape: f32[1,96], index: 6, kind: input, shape index: {}]
  %s7 = inlined_call_operand.vmem [shape: f32[2,1,1,8], index: 7, kind: input, shape index: {}]
  %s8 = inlined_call_operand.hbm [shape: f32[2,8,32], index: 8, kind: output, shape index: {0}]
  %s9 = inlined_call_operand.hbm [shape: f32[2,4,8,8], index: 9, kind: output, shape index: {1}]
  %10 = xla_tuple %s8, %s9
  %s11 = sld [smem:[#allocation0]]
  $region97: #{tpu_custom_call.1} parent=0
    _
  %s13 = ssub.s32 1, %s11
  %s14 = scalar_select 0, %s13, %s11
  $region1: #{tpu_custom_call.1} parent=0
    #allocation2 [shape = 'u8[8192]{0}', space=vmem, size = 0x2000, scoped, tag = 'input window, operand 0']
    #allocation3 [shape = 's32[2]{0}', space=sflag, size = 0x8, scoped, tag = 'scoped memory for tpu_custom_call.1']
    #allocation4 [shape = 's32[2]{0}', space=sflag, size = 0x8, scoped, tag = 'scoped memory for tpu_custom_call.1']
    #allocation5 [shape = 'u8[8192]{0}', space=vmem, size = 0x2000, scoped, tag = 'input window, operand 1']
    #allocation6 [shape = 's32[2]{0}', space=sflag, size = 0x8, scoped, tag = 'scoped memory for tpu_custom_call.1']
    #allocation7 [shape = 'u8[8192]{0}', space=vmem, size = 0x2000, scoped, tag = 'input window, operand 2']
    #allocation8 [shape = 'u8[16384]{0}', space=vmem, size = 0x4000, scoped, tag = 'input window, operand 3, single buffered']
    #allocation9 [shape = 's32[1]{0}', space=sflag, size = 0x4, scoped, tag = 'scoped memory for tpu_custom_call.1']
    #allocation10 [shape = 'u8[16384]{0}', space=vmem, size = 0x4000, scoped, tag = 'input window, operand 4, single buffered']
    #allocation11 [shape = 'u8[16384]{0}', space=vmem, size = 0x4000, scoped, tag = 'input window, operand 5, single buffered']
    #allocation12 [shape = 's32[1]{0}', space=sflag, size = 0x4, scoped, tag = 'scoped memory for tpu_custom_call.1']
    #allocation13 [shape = 'u8[8192]{0}', space=vmem, size = 0x2000, scoped, tag = 'output window, operand 0']
    #allocation14 [shape = 'u8[32768]{0}', space=vmem, size = 0x8000, scoped, tag = 'output window, operand 1']
    #allocation15 [shape = 's32[2]{0}', space=sflag, size = 0x8, scoped, tag = 'scoped memory for tpu_custom_call.1']
    %15 = vsyncpa [#allocation3], 0
    %s16 = scalar_lea.sflag [#allocation3], 1
    %17 = vsyncpa %s16, 0
    %18 = vsyncpa [#allocation6], 0
    %s19 = scalar_lea.sflag [#allocation6], 1
    %20 = vsyncpa %s19, 0
    %21 = vsyncpa [#allocation9], 0
    %22 = vsyncpa [#allocation12], 0
    %23 = vsyncpa [#allocation4], 0
    %s24 = scalar_lea.sflag [#allocation4], 1
    %25 = vsyncpa %s24, 0
    %26 = vsyncpa [#allocation15], 0
    %s27 = scalar_lea.sflag [#allocation15], 1
    %28 = vsyncpa %s27, 0
    loop: start=0, step=1, limit=4
    $region2: #{tpu_custom_call.1} parent=1 // loop_pre_header
      _
    $region3: #{tpu_custom_call.1} parent=1 // loop_header
      %s30 = sphi 0, %s34
      %p31 = scmp.ge.s32.totalorder %s30, 4
      %s40 = sphi 0, %s42
      %s43 = sphi 0, %s40
      %s44 = sphi 0, %s43
      %s60 = sphi 0, %s44
      %s66 = sphi 0, %s68
      %s69 = sphi 0, %s66
      %s70 = sphi 0, %s69
      %s86 = sphi 0, %s70
      %s92 = sphi 0, %s94
      %s95 = sphi 0, %s92
      %s96 = sphi 0, %s95
      %s112 = sphi 0, %s96
      %s116 = sphi 0, %s116
      %s118 = sphi 0, %s116
      %s119 = sphi 0, %s118
      %s133 = sphi 0, %s119
      %s137 = sphi 0, %s137
      %s139 = sphi 0, %s137
      %s140 = sphi 0, %s139
      %s154 = sphi 0, %s140
      %s158 = sphi 0, %s158
      %s160 = sphi 0, %s158
      %s161 = sphi 0, %s160
      %s175 = sphi 0, %s161
      %s179 = sphi 0, %s179
      %s181 = sphi 0, %s179
      %s182 = sphi 0, %s181
      %s196 = sphi 0, %s182
      %s202 = sphi 0, %s204
      %s205 = sphi 0, %s202
      %s206 = sphi 0, %s205
      %s222 = sphi 0, %s206
      %s228 = sphi 0, %s230
      %s231 = sphi 0, %s228
      %s232 = sphi 0, %s231
      %s248 = sphi 0, %s232
      %s254 = sphi 0, %s256
      %s257 = sphi 0, %s254
      %s258 = sphi 0, %s257
      %s274 = sphi 0, %s258
    $region4: #{tpu_custom_call.1} parent=1 // loop_header_branch
      %33 = sbr.rel (%p31) target = $region8
    $region5: #{tpu_custom_call.1} parent=1 // loop_body
      %s35 = ssub.s32 %s30, 1
      %s36 = ssub.s32 %s30, 2
      %s37 = sadd.s32 %s30, 1
      %s38 = ssub.s32 %s30, %s37
      %p39 = scmp.eq.s32.totalorder %s38, 0
      %s41 = sadd.s32 %s40, 1
      %s42 = scalar_select %p39, %s40, %s41
      %p45 = pneg %p39
      %p46 = scmp.eq.s32.totalorder %s30, 1
      %p47 = por %p45, %p46
      %p48 = scmp.ne.s32.totalorder %s40, %s43
      %p49 = scmp.eq.s32.totalorder %s30, 0
      %p50 = por %p48, %p49
      %p51 = scmp.ne.s32.totalorder %s40, %s43
      %p52 = scmp.eq.s32.totalorder %s35, 1
      %p53 = por %p51, %p52
      %p54 = scmp.ne.s32.totalorder %s43, %s44
      %p55 = scmp.eq.s32.totalorder %s35, 0
      %p56 = por %p54, %p55
      %p57 = scmp.ne.s32.totalorder %s43, %s44
      %p58 = scmp.eq.s32.totalorder %s36, 1
      %p59 = por %p57, %p58
      %p61 = scmp.ne.s32.totalorder %s44, %s60
      %p62 = scmp.eq.s32.totalorder %s36, 0
      %p63 = por %p61, %p62
      %s64 = ssub.s32 %s30, %s37
      %p65 = scmp.eq.s32.totalorder %s64, 0
      %s67 = sadd.s32 %s66, 1
      %s68 = scalar_select %p65, %s66, %s67
      %p71 = pneg %p65
      %p72 = scmp.eq.s32.totalorder %s30, 1
      %p73 = por %p71, %p72
      %p74 = scmp.ne.s32.totalorder %s66, %s69
      %p75 = scmp.eq.s32.totalorder %s30, 0
      %p76 = por %p74, %p75
      %p77 = scmp.ne.s32.totalorder %s66, %s69
      %p78 = scmp.eq.s32.totalorder %s35, 1
      %p79 = por %p77, %p78
      %p80 = scmp.ne.s32.totalorder %s69, %s70
      %p81 = scmp.eq.s32.totalorder %s35, 0
      %p82 = por %p80, %p81
      %p83 = scmp.ne.s32.totalorder %s69, %s70
      %p84 = scmp.eq.s32.totalorder %s36, 1
      %p85 = por %p83, %p84
      %p87 = scmp.ne.s32.totalorder %s70, %s86
      %p88 = scmp.eq.s32.totalorder %s36, 0
      %p89 = por %p87, %p88
      %s90 = ssub.s32 %s30, %s37
      %p91 = scmp.eq.s32.totalorder %s90, 0
      %s93 = sadd.s32 %s92, 1
      %s94 = scalar_select %p91, %s92, %s93
      %p97 = pneg %p91
      %p98 = scmp.eq.s32.totalorder %s30, 1
      %p99 = por %p97, %p98
      %p100 = scmp.ne.s32.totalorder %s92, %s95
      %p101 = scmp.eq.s32.totalorder %s30, 0
      %p102 = por %p100, %p101
      %p103 = scmp.ne.s32.totalorder %s92, %s95
      %p104 = scmp.eq.s32.totalorder %s35, 1
      %p105 = por %p103, %p104
      %p106 = scmp.ne.s32.totalorder %s95, %s96
      %p107 = scmp.eq.s32.totalorder %s35, 0
      %p108 = por %p106, %p107
      %p109 = scmp.ne.s32.totalorder %s95, %s96
      %p110 = scmp.eq.s32.totalorder %s36, 1
      %p111 = por %p109, %p110
      %p113 = scmp.ne.s32.totalorder %s96, %s112
      %p114 = scmp.eq.s32.totalorder %s36, 0
      %p115 = por %p113, %p114
      %s117 = sadd.s32 %s116, 1
      %p120 = scmp.eq.s32.totalorder %s30, 1
      %p121 = scmp.ne.s32.totalorder %s116, %s118
      %p122 = scmp.eq.s32.totalorder %s30, 0
      %p123 = por %p121, %p122
      %p124 = scmp.ne.s32.totalorder %s116, %s118
      %p125 = scmp.eq.s32.totalorder %s35, 1
      %p126 = por %p124, %p125
      %p127 = scmp.ne.s32.totalorder %s118, %s119
      %p128 = scmp.eq.s32.totalorder %s35, 0
      %p129 = por %p127, %p128
      %p130 = scmp.ne.s32.totalorder %s118, %s119
      %p131 = scmp.eq.s32.totalorder %s36, 1
      %p132 = por %p130, %p131
      %p134 = scmp.ne.s32.totalorder %s119, %s133
      %p135 = scmp.eq.s32.totalorder %s36, 0
      %p136 = por %p134, %p135
      %s138 = sadd.s32 %s137, 1
      %p141 = scmp.eq.s32.totalorder %s30, 1
      %p142 = scmp.ne.s32.totalorder %s137, %s139
      %p143 = scmp.eq.s32.totalorder %s30, 0
      %p144 = por %p142, %p143
      %p145 = scmp.ne.s32.totalorder %s137, %s139
      %p146 = scmp.eq.s32.totalorder %s35, 1
      %p147 = por %p145, %p146
      %p148 = scmp.ne.s32.totalorder %s139, %s140
      %p149 = scmp.eq.s32.totalorder %s35, 0
      %p150 = por %p148, %p149
      %p151 = scmp.ne.s32.totalorder %s139, %s140
      %p152 = scmp.eq.s32.totalorder %s36, 1
      %p153 = por %p151, %p152
      %p155 = scmp.ne.s32.totalorder %s140, %s154
      %p156 = scmp.eq.s32.totalorder %s36, 0
      %p157 = por %p155, %p156
      %s159 = sadd.s32 %s158, 1
      %p162 = scmp.eq.s32.totalorder %s30, 1
      %p163 = scmp.ne.s32.totalorder %s158, %s160
      %p164 = scmp.eq.s32.totalorder %s30, 0
      %p165 = por %p163, %p164
      %p166 = scmp.ne.s32.totalorder %s158, %s160
      %p167 = scmp.eq.s32.totalorder %s35, 1
      %p168 = por %p166, %p167
      %p169 = scmp.ne.s32.totalorder %s160, %s161
      %p170 = scmp.eq.s32.totalorder %s35, 0
      %p171 = por %p169, %p170
      %p172 = scmp.ne.s32.totalorder %s160, %s161
      %p173 = scmp.eq.s32.totalorder %s36, 1
      %p174 = por %p172, %p173
      %p176 = scmp.ne.s32.totalorder %s161, %s175
      %p177 = scmp.eq.s32.totalorder %s36, 0
      %p178 = por %p176, %p177
      %s180 = sadd.s32 %s179, 1
      %p183 = scmp.eq.s32.totalorder %s30, 1
      %p184 = scmp.ne.s32.totalorder %s179, %s181
      %p185 = scmp.eq.s32.totalorder %s30, 0
      %p186 = por %p184, %p185
      %p187 = scmp.ne.s32.totalorder %s179, %s181
      %p188 = scmp.eq.s32.totalorder %s35, 1
      %p189 = por %p187, %p188
      %p190 = scmp.ne.s32.totalorder %s181, %s182
      %p191 = scmp.eq.s32.totalorder %s35, 0
      %p192 = por %p190, %p191
      %p193 = scmp.ne.s32.totalorder %s181, %s182
      %p194 = scmp.eq.s32.totalorder %s36, 1
      %p195 = por %p193, %p194
      %p197 = scmp.ne.s32.totalorder %s182, %s196
      %p198 = scmp.eq.s32.totalorder %s36, 0
      %p199 = por %p197, %p198
      %s200 = ssub.s32 %s30, %s37
      %p201 = scmp.eq.s32.totalorder %s200, 0
      %s203 = sadd.s32 %s202, 1
      %s204 = scalar_select %p201, %s202, %s203
      %p207 = pneg %p201
      %p208 = scmp.eq.s32.totalorder %s30, 1
      %p209 = por %p207, %p208
      %p210 = scmp.ne.s32.totalorder %s202, %s205
      %p211 = scmp.eq.s32.totalorder %s30, 0
      %p212 = por %p210, %p211
      %p213 = scmp.ne.s32.totalorder %s202, %s205
      %p214 = scmp.eq.s32.totalorder %s35, 1
      %p215 = por %p213, %p214
      %p216 = scmp.ne.s32.totalorder %s205, %s206
      %p217 = scmp.eq.s32.totalorder %s35, 0
      %p218 = por %p216, %p217
      %p219 = scmp.ne.s32.totalorder %s205, %s206
      %p220 = scmp.eq.s32.totalorder %s36, 1
      %p221 = por %p219, %p220
      %p223 = scmp.ne.s32.totalorder %s206, %s222
      %p224 = scmp.eq.s32.totalorder %s36, 0
      %p225 = por %p223, %p224
      %s226 = ssub.s32 %s30, %s37
      %p227 = scmp.eq.s32.totalorder %s226, 0
      %s229 = sadd.s32 %s228, 1
      %s230 = scalar_select %p227, %s228, %s229
      %p233 = pneg %p227
      %p234 = scmp.eq.s32.totalorder %s30, 1
      %p235 = por %p233, %p234
      %p236 = scmp.ne.s32.totalorder %s228, %s231
      %p237 = scmp.eq.s32.totalorder %s30, 0
      %p238 = por %p236, %p237
      %p239 = scmp.ne.s32.totalorder %s228, %s231
      %p240 = scmp.eq.s32.totalorder %s35, 1
      %p241 = por %p239, %p240
      %p242 = scmp.ne.s32.totalorder %s231, %s232
      %p243 = scmp.eq.s32.totalorder %s35, 0
      %p244 = por %p242, %p243
      %p245 = scmp.ne.s32.totalorder %s231, %s232
      %p246 = scmp.eq.s32.totalorder %s36, 1
      %p247 = por %p245, %p246
      %p249 = scmp.ne.s32.totalorder %s232, %s248
      %p250 = scmp.eq.s32.totalorder %s36, 0
      %p251 = por %p249, %p250
      %s252 = ssub.s32 %s30, %s37
      %p253 = scmp.eq.s32.totalorder %s252, 0
      %s255 = sadd.s32 %s254, 1
      %s256 = scalar_select %p253, %s254, %s255
      %p259 = pneg %p253
      %p260 = scmp.eq.s32.totalorder %s30, 1
      %p261 = por %p259, %p260
      %p262 = scmp.ne.s32.totalorder %s254, %s257
      %p263 = scmp.eq.s32.totalorder %s30, 0
      %p264 = por %p262, %p263
      %p265 = scmp.ne.s32.totalorder %s254, %s257
      %p266 = scmp.eq.s32.totalorder %s35, 1
      %p267 = por %p265, %p266
      %p268 = scmp.ne.s32.totalorder %s257, %s258
      %p269 = scmp.eq.s32.totalorder %s35, 0
      %p270 = por %p268, %p269
      %p271 = scmp.ne.s32.totalorder %s257, %s258
      %p272 = scmp.eq.s32.totalorder %s36, 1
      %p273 = por %p271, %p272
      %p275 = scmp.ne.s32.totalorder %s258, %s274
      %p276 = scmp.eq.s32.totalorder %s36, 0
      %p277 = por %p275, %p276
      %p278 = scmp.le.s32.totalorder 1, %s30
      %p279 = scmp.lt.s32.totalorder %s30, 3
      %p280 = pnand %p278, %p279
      %p281 = pneg %p280
      // Predicated region
      $region9: #{tpu_custom_call.1} parent=5 // pred_check
        _
      $region10: #{tpu_custom_call.1} parent=5 // pred_check_branch
        %283 = sbr.rel (%p280) target = $region12
      $region11: #{tpu_custom_call.1} parent=5 // pred_region
        %s284 = ssub.s32 %s30, 1
        // Predicated region
        $region13: #{tpu_custom_call.1} parent=11 // pred_check
          %p285 = pneg %p129
        $region14: #{tpu_custom_call.1} parent=11 // pred_check_branch
          %287 = sbr.rel (%p285) target = $region16
        $region15: #{tpu_custom_call.1} parent=11 // pred_region
          %s289 = ssub.s32 512, 512
          %290 = vsyncadd [#allocation9], %s289
          %s291 = sshll.u32 [#allocation8], 4
          %s292 = int_to_ptr.vmem [resolvable:$true] %s291
          %297 = dma.hbm_to_vmem [thread:$0]  %s3, 512, %s292, [#allocation9], 128, 128, 8
        $region16: #{tpu_custom_call.1} parent=11 // pred_fallthru
          _
        // Predicated region
        $region17: #{tpu_custom_call.1} parent=11 // pred_check
          %p298 = pneg %p150
        $region18: #{tpu_custom_call.1} parent=11 // pred_check_branch
          %300 = sbr.rel (%p298) target = $region20
        $region19: #{tpu_custom_call.1} parent=11 // pred_region
          %s302 = ssub.s32 512, 512
          %303 = vsyncadd [#allocation9], %s302
          %s304 = sshll.u32 [#allocation10], 4
          %s305 = int_to_ptr.vmem [resolvable:$true] %s304
          %310 = dma.hbm_to_vmem [thread:$0]  %s4, 512, %s305, [#allocation9], 128, 128, 8
        $region20: #{tpu_custom_call.1} parent=11 // pred_fallthru
          _
        // Predicated region
        $region21: #{tpu_custom_call.1} parent=11 // pred_check
          %p311 = pneg %p171
        $region22: #{tpu_custom_call.1} parent=11 // pred_check_branch
          %313 = sbr.rel (%p311) target = $region24
        $region23: #{tpu_custom_call.1} parent=11 // pred_region
          %s315 = ssub.s32 512, 512
          %316 = vsyncadd [#allocation12], %s315
          %s317 = sshll.u32 [#allocation11], 4
          %s318 = int_to_ptr.vmem [resolvable:$true] %s317
          %323 = dma.hbm_to_vmem [thread:$0]  %s5, 512, %s318, [#allocation12], 128, 128, 8
        $region24: #{tpu_custom_call.1} parent=11 // pred_fallthru
          _
        // Predicated region
        $region25: #{tpu_custom_call.1} parent=11 // pred_check
          %p324 = pneg %p192
        $region26: #{tpu_custom_call.1} parent=11 // pred_check_branch
          %326 = sbr.rel (%p324) target = $region28
        $region27: #{tpu_custom_call.1} parent=11 // pred_region
          _
        $region28: #{tpu_custom_call.1} parent=11 // pred_fallthru
          _
      $region12: #{tpu_custom_call.1} parent=5 // pred_fallthru
        _
      %p327 = scmp.lt.s32.totalorder %s30, 2
      // Predicated region
      $region29: #{tpu_custom_call.1} parent=5 // pred_check
        %p328 = pneg %p327
      $region30: #{tpu_custom_call.1} parent=5 // pred_check_branch
        %330 = sbr.rel (%p328) target = $region32
      $region31: #{tpu_custom_call.1} parent=5 // pred_region
        // Predicated region
        $region33: #{tpu_custom_call.1} parent=31 // pred_check
          %p331 = pneg %p50
        $region34: #{tpu_custom_call.1} parent=31 // pred_check_branch
          %333 = sbr.rel (%p331) target = $region36
        $region35: #{tpu_custom_call.1} parent=31 // pred_region
          %s334 = sand.u32 %s40, 1
          %s335 = scalar_lea.sflag [#allocation3], %s334
          %s336 = sand.u32 %s40, 1
          %s337 = smul.addr %s336, 8
          %s338 = scalar_lea.vmem [#allocation2], %s337
          %s340 = ssub.s32 128, 128
          %341 = vsyncadd %s335, %s340
          %s342 = smul.addr %s30, 128
          %s343 = scalar_lea.hbm %s0, %s342
          %s345 = sshll.u32 %s338, 4
          %s346 = int_to_ptr.vmem [resolvable:$true] %s345
          %348 = dma.hbm_to_vmem [thread:$0]  %s343, 128, %s346, %s335
        $region36: #{tpu_custom_call.1} parent=31 // pred_fallthru
          _
        // Predicated region
        $region37: #{tpu_custom_call.1} parent=31 // pred_check
          %p349 = pneg %p76
        $region38: #{tpu_custom_call.1} parent=31 // pred_check_branch
          %351 = sbr.rel (%p349) target = $region40
        $region39: #{tpu_custom_call.1} parent=31 // pred_region
          %s352 = sand.u32 %s30, 1
          %s353 = scalar_lea.sflag [#allocation6], %s352
          %s354 = sand.u32 %s66, 1
          %s355 = smul.addr %s354, 8
          %s356 = scalar_lea.vmem [#allocation5], %s355
          %s358 = ssub.s32 128, 128
          %359 = vsyncadd %s353, %s358
          %s360 = smul.addr %s30, 128
          %s361 = scalar_lea.hbm %s1, %s360
          %s363 = sshll.u32 %s356, 4
          %s364 = int_to_ptr.vmem [resolvable:$true] %s363
          %366 = dma.hbm_to_vmem [thread:$0]  %s361, 128, %s364, %s353
        $region40: #{tpu_custom_call.1} parent=31 // pred_fallthru
          _
        // Predicated region
        $region41: #{tpu_custom_call.1} parent=31 // pred_check
          %p367 = pneg %p102
        $region42: #{tpu_custom_call.1} parent=31 // pred_check_branch
          %369 = sbr.rel (%p367) target = $region44
        $region43: #{tpu_custom_call.1} parent=31 // pred_region
          %s370 = sand.u32 %s30, 1
          %s371 = scalar_lea.sflag [#allocation6], %s370
          %s372 = sand.u32 %s92, 1
          %s373 = smul.addr %s372, 8
          %s374 = scalar_lea.vmem [#allocation7], %s373
          %s376 = ssub.s32 128, 128
          %377 = vsyncadd %s371, %s376
          %s378 = smul.addr %s30, 128
          %s379 = scalar_lea.hbm %s2, %s378
          %s381 = sshll.u32 %s374, 4
          %s382 = int_to_ptr.vmem [resolvable:$true] %s381
          %384 = dma.hbm_to_vmem [thread:$0]  %s379, 128, %s382, %s371
        $region44: #{tpu_custom_call.1} parent=31 // pred_fallthru
          _
        // Predicated region
        $region45: #{tpu_custom_call.1} parent=31 // pred_check
          %p385 = pneg %p212
        $region46: #{tpu_custom_call.1} parent=31 // pred_check_branch
          %387 = sbr.rel (%p385) target = $region48
        $region47: #{tpu_custom_call.1} parent=31 // pred_region
          %p388 = scmp.lt.s32.totalorder %s30, 1
          %s389 = scalar_select %p388, %s30, 1
          %s390 = scalar_lea.vmem %s7, %s389
        $region48: #{tpu_custom_call.1} parent=31 // pred_fallthru
          _
      $region32: #{tpu_custom_call.1} parent=5 // pred_fallthru
        _
      %p391 = scmp.le.s32.totalorder 1, %s30
      %p392 = scmp.lt.s32.totalorder %s30, 3
      %p393 = pnand %p391, %p392
      %p394 = pneg %p393
      // Predicated region
      $region49: #{tpu_custom_call.1} parent=5 // pred_check
        _
      $region50: #{tpu_custom_call.1} parent=5 // pred_check_branch
        %396 = sbr.rel (%p393) target = $region52
      $region51: #{tpu_custom_call.1} parent=5 // pred_region
        %s397 = ssub.s32 %s30, 1
        %s398 = sand.u32 %s43, 1
        %s399 = scalar_lea.sflag [#allocation3], %s398
        %s400 = sand.u32 %s43, 1
        %s401 = smul.addr %s400, 8
        %s402 = scalar_lea.vmem [#allocation2], %s401
        // Predicated region
        $region53: #{tpu_custom_call.1} parent=51 // pred_check
          %p403 = pneg %p56
        $region54: #{tpu_custom_call.1} parent=51 // pred_check_branch
          %405 = sbr.rel (%p403) target = $region56
        $region55: #{tpu_custom_call.1} parent=51 // pred_region
          %406 = dma.done %s399, 128
        $region56: #{tpu_custom_call.1} parent=51 // pred_fallthru
          _
        %s407 = sand.u32 %s35, 1
        %s408 = scalar_lea.sflag [#allocation6], %s407
        %s409 = sand.u32 %s69, 1
        %s410 = smul.addr %s409, 8
        %s411 = scalar_lea.vmem [#allocation5], %s410
        // Predicated region
        $region57: #{tpu_custom_call.1} parent=51 // pred_check
          %p412 = pneg %p82
        $region58: #{tpu_custom_call.1} parent=51 // pred_check_branch
          %414 = sbr.rel (%p412) target = $region60
        $region59: #{tpu_custom_call.1} parent=51 // pred_region
          %415 = dma.done %s408, 128
        $region60: #{tpu_custom_call.1} parent=51 // pred_fallthru
          _
        %s416 = sand.u32 %s35, 1
        %s417 = scalar_lea.sflag [#allocation6], %s416
        %s418 = sand.u32 %s95, 1
        %s419 = smul.addr %s418, 8
        %s420 = scalar_lea.vmem [#allocation7], %s419
        // Predicated region
        $region61: #{tpu_custom_call.1} parent=51 // pred_check
          %p421 = pneg %p108
        $region62: #{tpu_custom_call.1} parent=51 // pred_check_branch
          %423 = sbr.rel (%p421) target = $region64
        $region63: #{tpu_custom_call.1} parent=51 // pred_region
          %424 = dma.done %s417, 128
        $region64: #{tpu_custom_call.1} parent=51 // pred_fallthru
          _
        // Predicated region
        $region65: #{tpu_custom_call.1} parent=51 // pred_check
          %p425 = pneg %p129
        $region66: #{tpu_custom_call.1} parent=51 // pred_check_branch
          %427 = sbr.rel (%p425) target = $region68
        $region67: #{tpu_custom_call.1} parent=51 // pred_region
          %428 = dma.done [#allocation9], 512
        $region68: #{tpu_custom_call.1} parent=51 // pred_fallthru
          _
        // Predicated region
        $region69: #{tpu_custom_call.1} parent=51 // pred_check
          %p429 = pneg %p150
        $region70: #{tpu_custom_call.1} parent=51 // pred_check_branch
          %431 = sbr.rel (%p429) target = $region72
        $region71: #{tpu_custom_call.1} parent=51 // pred_region
          %432 = dma.done [#allocation9], 512
        $region72: #{tpu_custom_call.1} parent=51 // pred_fallthru
          _
        // Predicated region
        $region73: #{tpu_custom_call.1} parent=51 // pred_check
          %p433 = pneg %p171
        $region74: #{tpu_custom_call.1} parent=51 // pred_check_branch
          %435 = sbr.rel (%p433) target = $region76
        $region75: #{tpu_custom_call.1} parent=51 // pred_region
          %436 = dma.done [#allocation12], 512
        $region76: #{tpu_custom_call.1} parent=51 // pred_fallthru
          _
        %s437 = sand.u32 %s43, 1
        %s438 = scalar_lea.sflag [#allocation3], %s437
        %s439 = sand.u32 %s43, 1
        %s440 = smul.addr %s439, 8
        %s441 = scalar_lea.vmem [#allocation2], %s440
        %p442 = pneg %p56
        %p443 = pneg %p53
        %s444 = sand.u32 %s35, 1
        %s445 = scalar_lea.sflag [#allocation6], %s444
        %s446 = sand.u32 %s69, 1
        %s447 = smul.addr %s446, 8
        %s448 = scalar_lea.vmem [#allocation5], %s447
        %p449 = pneg %p82
        %p450 = pneg %p79
        %s451 = sand.u32 %s35, 1
        %s452 = scalar_lea.sflag [#allocation6], %s451
        %s453 = sand.u32 %s95, 1
        %s454 = smul.addr %s453, 8
        %s455 = scalar_lea.vmem [#allocation7], %s454
        %p456 = pneg %p108
        %p457 = pneg %p105
        %p458 = pneg %p129
        %p459 = pneg %p126
        %p460 = pneg %p150
        %p461 = pneg %p147
        %p462 = pneg %p171
        %p463 = pneg %p168
        %p464 = pneg %p192
        %p465 = pneg %p189
        %p466 = scmp.lt.s32.totalorder %s35, 1
        %s467 = scalar_select %p466, %s35, 1
        %s468 = scalar_lea.vmem %s7, %s467
        %p469 = pneg %p218
        %p470 = pneg %p215
        %p471 = pneg %p244
        %p472 = pneg %p241
        %s473 = sand.u32 %s231, 1
        %s474 = scalar_lea.sflag [#allocation4], %s473
        %s475 = sand.u32 %s231, 1
        %s476 = smul.addr %s475, 8
        %s477 = scalar_lea.vmem [#allocation13], %s476
        %p478 = pneg %p270
        %p479 = pneg %p267
        %s480 = sand.u32 %s257, 1
        %s481 = scalar_lea.sflag [#allocation15], %s480
        %s482 = sand.u32 %s257, 1
        %s483 = smul.addr %s482, 32
        %s484 = scalar_lea.vmem [#allocation14], %s483
        %p485 = scmp.lt.s32.totalorder %s35, 1
        %s486 = scalar_select %p485, %s35, 1
        %s487 = scalar_lea.vmem %s7, %s486
        %v488 = vld [vmem:[%s402] sm:$0xff]
        %v489 = vld [vmem:[#allocation8] sm:$0xff]
        %v490 = vld [vmem:[#allocation8 + $0x8] sm:$0xff]
        %v491 = vld [vmem:[#allocation8 + $0x10] sm:$0xff]
        %v492 = vld [vmem:[#allocation8 + $0x18] sm:$0xff]
        %v493 = vld [vmem:[%s6] sm:$0x1]
        %v495 = vlaneseq
        %v496 = vshrl.u32 %v495, 7
        %v497 = vsub.s32 0, %v496
        %v498 = vrot.slane %v493, %v497
        %vm500 = vcmask 261120
        %v502 = vsel %vm500, %v488, 0
        %504 = vmatprep.subr.mxu0 0.0
        %505 = vmatpush1.msra.mxu0 %v489
        %506 = vmatprep.subr.mxu0 0.0
        %507 = vmatpush1.msra.mxu0 %v490
        %508 = vmatprep.subr.mxu0 0.0
        %509 = vmatpush1.msra.mxu0 %v491
        %510 = vmatprep.subr.mxu0 0.0
        %511 = vmatpush1.msra.mxu0 %v492
        %512 = vmatprep.subr.mxu0 0.0
        %513 = vmatpush1.msra.mxu0 0.0
        %514 = vmatprep.subr.mxu0 0.0
        %515 = vmatpush1.msra.mxu0 0.0
        %516 = vmatprep.subr.mxu0 0.0
        %517 = vmatpush1.msra.mxu0 0.0
        %518 = vmatprep.subr.mxu0 0.0
        %519 = vmatpush1.msra.mxu0 0.0
        %520 = vmatprep.subr.mxu0 0.0
        %521 = vmatpush1.msra.mxu0 0.0
        %522 = vmatprep.subr.mxu0 0.0
        %523 = vmatpush1.msra.mxu0 0.0
        %524 = vmatprep.subr.mxu0 0.0
        %525 = vmatpush1.msra.mxu0 0.0
        %526 = vmatprep.subr.mxu0 0.0
        %527 = vmatpush1.msra.mxu0 0.0
        %528 = vmatprep.subr.mxu0 0.0
        %529 = vmatpush1.msra.mxu0 0.0
        %530 = vmatprep.subr.mxu0 0.0
        %531 = vmatpush1.msra.mxu0 0.0
        %532 = vmatprep.subr.mxu0 0.0
        %533 = vmatpush1.msra.mxu0 0.0
        %534 = vmatprep.subr.mxu0 0.0
        %535 = vmatpush1.msra.mxu0 0.0
        %536 = vmatprep.subr.mxu0 0.0
        %537 = vmatpush1.msra.mxu0 0.0
        %538 = vmatprep.subr.mxu0 0.0
        %539 = vmatpush1.msra.mxu0 0.0
        %540 = vmatprep.subr.mxu0 0.0
        %541 = vmatpush1.msra.mxu0 0.0
        %542 = vmatprep.subr.mxu0 0.0
        %543 = vmatpush1.msra.mxu0 0.0
        %544 = vmatprep.subr.mxu0 0.0
        %545 = vmatpush1.msra.mxu0 0.0
        %546 = vmatprep.subr.mxu0 0.0
        %547 = vmatpush1.msra.mxu0 0.0
        %548 = vmatprep.subr.mxu0 0.0
        %549 = vmatpush1.msra.mxu0 0.0
        %550 = vmatprep.subr.mxu0 0.0
        %551 = vmatpush1.msra.mxu0 0.0
        %552 = vmatprep.subr.mxu0 0.0
        %553 = vmatpush1.msra.mxu0 0.0
        %554 = vmatprep.subr.mxu0 0.0
        %555 = vmatpush1.msra.mxu0 0.0
        %556 = vmatprep.subr.mxu0 0.0
        %557 = vmatpush1.msra.mxu0 0.0
        %558 = vmatprep.subr.mxu0 0.0
        %559 = vmatpush1.msra.mxu0 0.0
        %560 = vmatprep.subr.mxu0 0.0
        %561 = vmatpush1.msra.mxu0 0.0
        %562 = vmatprep.subr.mxu0 0.0
        %563 = vmatpush1.msra.mxu0 0.0
        %564 = vmatprep.subr.mxu0 0.0
        %565 = vmatpush1.msra.mxu0 0.0
        %566 = vmatprep.subr.mxu0 0.0
        %567 = vmatpush1.msra.mxu0 0.0
        %568 = vmatprep.mubr.f32.mxu0 0.0
        %569 = vmatmul.mubr.f32.gmra.mrb[0].mxu0 %v502
        %v570 = vpop.f32.mrb[0].mxu0
        %v571 = vadd.f32 %v498, %v570
        %v572 = vpop.f32.mrb[0].mxu0
        %573 = vdwg.mxu0
        %v574 = vld [vmem:[%s411] sm:$0xff]
        %v575 = vld [vmem:[#allocation10] sm:$0xff]
        %v576 = vld [vmem:[#allocation10 + $0x8] sm:$0xff]
        %v577 = vld [vmem:[#allocation10 + $0x10] sm:$0xff]
        %v578 = vld [vmem:[#allocation10 + $0x18] sm:$0xff]
        %579 = vrot.lane.b32.xlu0 %v498, 96
        %v580 = vpop.permute.xlu0 %579
        %v583 = vsel %vm500, %v574, 0
        %585 = vmatprep.subr.mxu0 0.0
        %586 = vmatpush1.msra.mxu0 %v575
        %587 = vmatprep.subr.mxu0 0.0
        %588 = vmatpush1.msra.mxu0 %v576
        %589 = vmatprep.subr.mxu0 0.0
        %590 = vmatpush1.msra.mxu0 %v577
        %591 = vmatprep.subr.mxu0 0.0
        %592 = vmatpush1.msra.mxu0 %v578
        %593 = vmatprep.subr.mxu0 0.0
        %594 = vmatpush1.msra.mxu0 0.0
        %595 = vmatprep.subr.mxu0 0.0
        %596 = vmatpush1.msra.mxu0 0.0
        %597 = vmatprep.subr.mxu0 0.0
        %598 = vmatpush1.msra.mxu0 0.0
        %599 = vmatprep.subr.mxu0 0.0
        %600 = vmatpush1.msra.mxu0 0.0
        %601 = vmatprep.subr.mxu0 0.0
        %602 = vmatpush1.msra.mxu0 0.0
        %603 = vmatprep.subr.mxu0 0.0
        %604 = vmatpush1.msra.mxu0 0.0
        %605 = vmatprep.subr.mxu0 0.0
        %606 = vmatpush1.msra.mxu0 0.0
        %607 = vmatprep.subr.mxu0 0.0
        %608 = vmatpush1.msra.mxu0 0.0
        %609 = vmatprep.subr.mxu0 0.0
        %610 = vmatpush1.msra.mxu0 0.0
        %611 = vmatprep.subr.mxu0 0.0
        %612 = vmatpush1.msra.mxu0 0.0
        %613 = vmatprep.subr.mxu0 0.0
        %614 = vmatpush1.msra.mxu0 0.0
        %615 = vmatprep.subr.mxu0 0.0
        %616 = vmatpush1.msra.mxu0 0.0
        %617 = vmatprep.subr.mxu0 0.0
        %618 = vmatpush1.msra.mxu0 0.0
        %619 = vmatprep.subr.mxu0 0.0
        %620 = vmatpush1.msra.mxu0 0.0
        %621 = vmatprep.subr.mxu0 0.0
        %622 = vmatpush1.msra.mxu0 0.0
        %623 = vmatprep.subr.mxu0 0.0
        %624 = vmatpush1.msra.mxu0 0.0
        %625 = vmatprep.subr.mxu0 0.0
        %626 = vmatpush1.msra.mxu0 0.0
        %627 = vmatprep.subr.mxu0 0.0
        %628 = vmatpush1.msra.mxu0 0.0
        %629 = vmatprep.subr.mxu0 0.0
        %630 = vmatpush1.msra.mxu0 0.0
        %631 = vmatprep.subr.mxu0 0.0
        %632 = vmatpush1.msra.mxu0 0.0
        %633 = vmatprep.subr.mxu0 0.0
        %634 = vmatpush1.msra.mxu0 0.0
        %635 = vmatprep.subr.mxu0 0.0
        %636 = vmatpush1.msra.mxu0 0.0
        %637 = vmatprep.subr.mxu0 0.0
        %638 = vmatpush1.msra.mxu0 0.0
        %639 = vmatprep.subr.mxu0 0.0
        %640 = vmatpush1.msra.mxu0 0.0
        %641 = vmatprep.subr.mxu0 0.0
        %642 = vmatpush1.msra.mxu0 0.0
        %643 = vmatprep.subr.mxu0 0.0
        %644 = vmatpush1.msra.mxu0 0.0
        %645 = vmatprep.subr.mxu0 0.0
        %646 = vmatpush1.msra.mxu0 0.0
        %647 = vmatprep.subr.mxu0 0.0
        %648 = vmatpush1.msra.mxu0 0.0
        %649 = vmatprep.mubr.f32.mxu0 0.0
        %650 = vmatmul.mubr.f32.gmra.mrb[0].mxu0 %v583
        %v651 = vpop.f32.mrb[0].mxu0
        %v652 = vadd.f32 %v580, %v651
        %v653 = vpop.f32.mrb[0].mxu0
        %654 = vdwg.mxu0
        %v655 = vld [vmem:[%s420] sm:$0xff]
        %v656 = vld [vmem:[#allocation11] sm:$0xff]
        %v657 = vld [vmem:[#allocation11 + $0x8] sm:$0xff]
        %v658 = vld [vmem:[#allocation11 + $0x10] sm:$0xff]
        %v659 = vld [vmem:[#allocation11 + $0x18] sm:$0xff]
        %660 = vrot.lane.b32.xlu0 %v498, 64
        %v661 = vpop.permute.xlu0 %660
        %v664 = vsel %vm500, %v655, 0
        %666 = vmatprep.subr.mxu0 0.0
        %667 = vmatpush1.msra.mxu0 %v656
        %668 = vmatprep.subr.mxu0 0.0
        %669 = vmatpush1.msra.mxu0 %v657
        %670 = vmatprep.subr.mxu0 0.0
        %671 = vmatpush1.msra.mxu0 %v658
        %672 = vmatprep.subr.mxu0 0.0
        %673 = vmatpush1.msra.mxu0 %v659
        %674 = vmatprep.subr.mxu0 0.0
        %675 = vmatpush1.msra.mxu0 0.0
        %676 = vmatprep.subr.mxu0 0.0
        %677 = vmatpush1.msra.mxu0 0.0
        %678 = vmatprep.subr.mxu0 0.0
        %679 = vmatpush1.msra.mxu0 0.0
        %680 = vmatprep.subr.mxu0 0.0
        %681 = vmatpush1.msra.mxu0 0.0
        %682 = vmatprep.subr.mxu0 0.0
        %683 = vmatpush1.msra.mxu0 0.0
        %684 = vmatprep.subr.mxu0 0.0
        %685 = vmatpush1.msra.mxu0 0.0
        %686 = vmatprep.subr.mxu0 0.0
        %687 = vmatpush1.msra.mxu0 0.0
        %688 = vmatprep.subr.mxu0 0.0
        %689 = vmatpush1.msra.mxu0 0.0
        %690 = vmatprep.subr.mxu0 0.0
        %691 = vmatpush1.msra.mxu0 0.0
        %692 = vmatprep.subr.mxu0 0.0
        %693 = vmatpush1.msra.mxu0 0.0
        %694 = vmatprep.subr.mxu0 0.0
        %695 = vmatpush1.msra.mxu0 0.0
        %696 = vmatprep.subr.mxu0 0.0
        %697 = vmatpush1.msra.mxu0 0.0
        %698 = vmatprep.subr.mxu0 0.0
        %699 = vmatpush1.msra.mxu0 0.0
        %700 = vmatprep.subr.mxu0 0.0
        %701 = vmatpush1.msra.mxu0 0.0
        %702 = vmatprep.subr.mxu0 0.0
        %703 = vmatpush1.msra.mxu0 0.0
        %704 = vmatprep.subr.mxu0 0.0
        %705 = vmatpush1.msra.mxu0 0.0
        %706 = vmatprep.subr.mxu0 0.0
        %707 = vmatpush1.msra.mxu0 0.0
        %708 = vmatprep.subr.mxu0 0.0
        %709 = vmatpush1.msra.mxu0 0.0
        %710 = vmatprep.subr.mxu0 0.0
        %711 = vmatpush1.msra.mxu0 0.0
        %712 = vmatprep.subr.mxu0 0.0
        %713 = vmatpush1.msra.mxu0 0.0
        %714 = vmatprep.subr.mxu0 0.0
        %715 = vmatpush1.msra.mxu0 0.0
        %716 = vmatprep.subr.mxu0 0.0
        %717 = vmatpush1.msra.mxu0 0.0
        %718 = vmatprep.subr.mxu0 0.0
        %719 = vmatpush1.msra.mxu0 0.0
        %720 = vmatprep.subr.mxu0 0.0
        %721 = vmatpush1.msra.mxu0 0.0
        %722 = vmatprep.subr.mxu0 0.0
        %723 = vmatpush1.msra.mxu0 0.0
        %724 = vmatprep.subr.mxu0 0.0
        %725 = vmatpush1.msra.mxu0 0.0
        %726 = vmatprep.subr.mxu0 0.0
        %727 = vmatpush1.msra.mxu0 0.0
        %728 = vmatprep.subr.mxu0 0.0
        %729 = vmatpush1.msra.mxu0 0.0
        %730 = vmatprep.mubr.f32.mxu0 0.0
        %731 = vmatmul.mubr.f32.gmra.mrb[0].mxu0 %v664
        %v732 = vpop.f32.mrb[0].mxu0
        %v733 = vadd.f32 %v661, %v732
        %v734 = vpop.f32.mrb[0].mxu0
        %735 = vdwg.mxu0
        %v736 = vmul.f32 %v571, 0.35355338
        %v737 = vld [vmem:[%s487] sm:$0x1]
        %v739 = vlaneseq
        %v740 = vshrl.u32 %v739, 7
        %v741 = vsub.s32 0, %v740
        %v742 = vrot.slane %v737, %v741
        %vm744 = vcmask 64512
        %v746 = vsel %vm744, %v736, 0
        %v749 = vsel %vm744, %v652, 0
        %751 = vmatprep.subr.mxu0 0.0
        %752 = vmatpush1.xpose.msra.mxu0 %v749
        %753 = vmatprep.subr.mxu0 0.0
        %754 = vmatpush1.xpose.msra.mxu0 0.0
        %755 = vmatprep.subr.mxu0 0.0
        %756 = vmatpush1.xpose.msra.mxu0 0.0
        %757 = vmatprep.subr.mxu0 0.0
        %758 = vmatpush1.xpose.msra.mxu0 0.0
        %759 = vmatprep.subr.mxu0 0.0
        %760 = vmatpush1.xpose.msra.mxu0 0.0
        %761 = vmatprep.subr.mxu0 0.0
        %762 = vmatpush1.xpose.msra.mxu0 0.0
        %763 = vmatprep.subr.mxu0 0.0
        %764 = vmatpush1.xpose.msra.mxu0 0.0
        %765 = vmatprep.subr.mxu0 0.0
        %766 = vmatpush1.xpose.msra.mxu0 0.0
        %767 = vmatprep.subr.mxu0 0.0
        %768 = vmatpush1.xpose.msra.mxu0 0.0
        %769 = vmatprep.subr.mxu0 0.0
        %770 = vmatpush1.xpose.msra.mxu0 0.0
        %771 = vmatprep.subr.mxu0 0.0
        %772 = vmatpush1.xpose.msra.mxu0 0.0
        %773 = vmatprep.subr.mxu0 0.0
        %774 = vmatpush1.xpose.msra.mxu0 0.0
        %775 = vmatprep.subr.mxu0 0.0
        %776 = vmatpush1.xpose.msra.mxu0 0.0
        %777 = vmatprep.subr.mxu0 0.0
        %778 = vmatpush1.xpose.msra.mxu0 0.0
        %779 = vmatprep.subr.mxu0 0.0
        %780 = vmatpush1.xpose.msra.mxu0 0.0
        %781 = vmatprep.subr.mxu0 0.0
        %782 = vmatpush1.xpose.msra.mxu0 0.0
        %783 = vmatprep.subr.mxu0 0.0
        %784 = vmatpush1.xpose.msra.mxu0 0.0
        %785 = vmatprep.subr.mxu0 0.0
        %786 = vmatpush1.xpose.msra.mxu0 0.0
        %787 = vmatprep.subr.mxu0 0.0
        %788 = vmatpush1.xpose.msra.mxu0 0.0
        %789 = vmatprep.subr.mxu0 0.0
        %790 = vmatpush1.xpose.msra.mxu0 0.0
        %791 = vmatprep.subr.mxu0 0.0
        %792 = vmatpush1.xpose.msra.mxu0 0.0
        %793 = vmatprep.subr.mxu0 0.0
        %794 = vmatpush1.xpose.msra.mxu0 0.0
        %795 = vmatprep.subr.mxu0 0.0
        %796 = vmatpush1.xpose.msra.mxu0 0.0
        %797 = vmatprep.subr.mxu0 0.0
        %798 = vmatpush1.xpose.msra.mxu0 0.0
        %799 = vmatprep.subr.mxu0 0.0
        %800 = vmatpush1.xpose.msra.mxu0 0.0
        %801 = vmatprep.subr.mxu0 0.0
        %802 = vmatpush1.xpose.msra.mxu0 0.0
        %803 = vmatprep.subr.mxu0 0.0
        %804 = vmatpush1.xpose.msra.mxu0 0.0
        %805 = vmatprep.subr.mxu0 0.0
        %806 = vmatpush1.xpose.msra.mxu0 0.0
        %807 = vmatprep.subr.mxu0 0.0
        %808 = vmatpush1.xpose.msra.mxu0 0.0
        %809 = vmatprep.subr.mxu0 0.0
        %810 = vmatpush1.xpose.msra.mxu0 0.0
        %811 = vmatprep.subr.mxu0 0.0
        %812 = vmatpush1.xpose.msra.mxu0 0.0
        %813 = vmatprep.subr.mxu0 0.0
        %814 = vmatpush1.xpose.msra.mxu0 0.0
        %815 = vmatprep.mubr.f32.mxu0 0.0
        %816 = vmatmul.mubr.f32.gmra.mrb[0].mxu0 %v746
        %v817 = vpop.f32.mrb[0].mxu0
        %v818 = vadd.f32 %v742, %v817
        %v819 = vpop.f32.mrb[0].mxu0
        %820 = vdwg.mxu0
        %v821 = vsel %vm744, %v818, -inf
        %822 = vmax.xlane.f32.xlu0 %v821
        %v823 = vpop.xlane.xlu0 %822
        %v824 = vsub.f32 %v818, %v823
        %v825 = vmul.f32 %v824, 1.442695
        %v826 = vpow.pop %v825
        %v827 = vsel %vm744, %v826, 0.0
        %828 = vadd.xlane.f32.xlu0 %v827
        %v829 = vpop.xlane.xlu0 %828
        %v830 = vrcp.pop %v829
        %v831 = vmul.f32 %v826, %v830
        %832 = vst.msk [vmem:[%s484] sm:$0xff] %vm744, %v831
        %v834 = vsel %vm744, %v831, 0
        %836 = vmatprep.subr.mxu0 0.0
        %837 = vmatpush1.msra.mxu0 %v733
        %838 = vmatprep.subr.mxu0 0.0
        %839 = vmatpush1.msra.mxu0 0.0
        %840 = vmatprep.subr.mxu0 0.0
        %841 = vmatpush1.msra.mxu0 0.0
        %842 = vmatprep.subr.mxu0 0.0
        %843 = vmatpush1.msra.mxu0 0.0
        %844 = vmatprep.subr.mxu0 0.0
        %845 = vmatpush1.msra.mxu0 0.0
        %846 = vmatprep.subr.mxu0 0.0
        %847 = vmatpush1.msra.mxu0 0.0
        %848 = vmatprep.subr.mxu0 0.0
        %849 = vmatpush1.msra.mxu0 0.0
        %850 = vmatprep.subr.mxu0 0.0
        %851 = vmatpush1.msra.mxu0 0.0
        %852 = vmatprep.subr.mxu0 0.0
        %853 = vmatpush1.msra.mxu0 0.0
        %854 = vmatprep.subr.mxu0 0.0
        %855 = vmatpush1.msra.mxu0 0.0
        %856 = vmatprep.subr.mxu0 0.0
        %857 = vmatpush1.msra.mxu0 0.0
        %858 = vmatprep.subr.mxu0 0.0
        %859 = vmatpush1.msra.mxu0 0.0
        %860 = vmatprep.subr.mxu0 0.0
        %861 = vmatpush1.msra.mxu0 0.0
        %862 = vmatprep.subr.mxu0 0.0
        %863 = vmatpush1.msra.mxu0 0.0
        %864 = vmatprep.subr.mxu0 0.0
        %865 = vmatpush1.msra.mxu0 0.0
        %866 = vmatprep.subr.mxu0 0.0
        %867 = vmatpush1.msra.mxu0 0.0
        %868 = vmatprep.subr.mxu0 0.0
        %869 = vmatpush1.msra.mxu0 0.0
        %870 = vmatprep.subr.mxu0 0.0
        %871 = vmatpush1.msra.mxu0 0.0
        %872 = vmatprep.subr.mxu0 0.0
        %873 = vmatpush1.msra.mxu0 0.0
        %874 = vmatprep.subr.mxu0 0.0
        %875 = vmatpush1.msra.mxu0 0.0
        %876 = vmatprep.subr.mxu0 0.0
        %877 = vmatpush1.msra.mxu0 0.0
        %878 = vmatprep.subr.mxu0 0.0
        %879 = vmatpush1.msra.mxu0 0.0
        %880 = vmatprep.subr.mxu0 0.0
        %881 = vmatpush1.msra.mxu0 0.0
        %882 = vmatprep.subr.mxu0 0.0
        %883 = vmatpush1.msra.mxu0 0.0
        %884 = vmatprep.subr.mxu0 0.0
        %885 = vmatpush1.msra.mxu0 0.0
        %886 = vmatprep.subr.mxu0 0.0
        %887 = vmatpush1.msra.mxu0 0.0
        %888 = vmatprep.subr.mxu0 0.0
        %889 = vmatpush1.msra.mxu0 0.0
        %890 = vmatprep.subr.mxu0 0.0
        %891 = vmatpush1.msra.mxu0 0.0
        %892 = vmatprep.subr.mxu0 0.0
        %893 = vmatpush1.msra.mxu0 0.0
        %894 = vmatprep.subr.mxu0 0.0
        %895 = vmatpush1.msra.mxu0 0.0
        %896 = vmatprep.subr.mxu0 0.0
        %897 = vmatpush1.msra.mxu0 0.0
        %898 = vmatprep.subr.mxu0 0.0
        %899 = vmatpush1.msra.mxu0 0.0
        %900 = vmatprep.mubr.f32.mxu0 0.0
        %901 = vmatmul.mubr.f32.gmra.mrb[0].mxu0 %v834
        %v902 = vpop.f32.mrb[0].mxu0
        %v903 = vadd.f32 0.0, %v902
        %v904 = vpop.f32.mrb[0].mxu0
        %905 = vdwg.mxu0
        %906 = vrot.lane.b32.xlu0 %v736, 120
        %v907 = vpop.permute.xlu0 %906
        %908 = vrot.lane.b32.xlu0 %v652, 120
        %v909 = vpop.permute.xlu0 %908
        %v910 = vsel %vm744, %v907, 0
        %v912 = vsel %vm744, %v909, 0
        %914 = vmatprep.subr.mxu0 0.0
        %915 = vmatpush1.xpose.msra.mxu0 %v912
        %916 = vmatprep.subr.mxu0 0.0
        %917 = vmatpush1.xpose.msra.mxu0 0.0
        %918 = vmatprep.subr.mxu0 0.0
        %919 = vmatpush1.xpose.msra.mxu0 0.0
        %920 = vmatprep.subr.mxu0 0.0
        %921 = vmatpush1.xpose.msra.mxu0 0.0
        %922 = vmatprep.subr.mxu0 0.0
        %923 = vmatpush1.xpose.msra.mxu0 0.0
        %924 = vmatprep.subr.mxu0 0.0
        %925 = vmatpush1.xpose.msra.mxu0 0.0
        %926 = vmatprep.subr.mxu0 0.0
        %927 = vmatpush1.xpose.msra.mxu0 0.0
        %928 = vmatprep.subr.mxu0 0.0
        %929 = vmatpush1.xpose.msra.mxu0 0.0
        %930 = vmatprep.subr.mxu0 0.0
        %931 = vmatpush1.xpose.msra.mxu0 0.0
        %932 = vmatprep.subr.mxu0 0.0
        %933 = vmatpush1.xpose.msra.mxu0 0.0
        %934 = vmatprep.subr.mxu0 0.0
        %935 = vmatpush1.xpose.msra.mxu0 0.0
        %936 = vmatprep.subr.mxu0 0.0
        %937 = vmatpush1.xpose.msra.mxu0 0.0
        %938 = vmatprep.subr.mxu0 0.0
        %939 = vmatpush1.xpose.msra.mxu0 0.0
        %940 = vmatprep.subr.mxu0 0.0
        %941 = vmatpush1.xpose.msra.mxu0 0.0
        %942 = vmatprep.subr.mxu0 0.0
        %943 = vmatpush1.xpose.msra.mxu0 0.0
        %944 = vmatprep.subr.mxu0 0.0
        %945 = vmatpush1.xpose.msra.mxu0 0.0
        %946 = vmatprep.subr.mxu0 0.0
        %947 = vmatpush1.xpose.msra.mxu0 0.0
        %948 = vmatprep.subr.mxu0 0.0
        %949 = vmatpush1.xpose.msra.mxu0 0.0
        %950 = vmatprep.subr.mxu0 0.0
        %951 = vmatpush1.xpose.msra.mxu0 0.0
        %952 = vmatprep.subr.mxu0 0.0
        %953 = vmatpush1.xpose.msra.mxu0 0.0
        %954 = vmatprep.subr.mxu0 0.0
        %955 = vmatpush1.xpose.msra.mxu0 0.0
        %956 = vmatprep.subr.mxu0 0.0
        %957 = vmatpush1.xpose.msra.mxu0 0.0
        %958 = vmatprep.subr.mxu0 0.0
        %959 = vmatpush1.xpose.msra.mxu0 0.0
        %960 = vmatprep.subr.mxu0 0.0
        %961 = vmatpush1.xpose.msra.mxu0 0.0
        %962 = vmatprep.subr.mxu0 0.0
        %963 = vmatpush1.xpose.msra.mxu0 0.0
        %964 = vmatprep.subr.mxu0 0.0
        %965 = vmatpush1.xpose.msra.mxu0 0.0
        %966 = vmatprep.subr.mxu0 0.0
        %967 = vmatpush1.xpose.msra.mxu0 0.0
        %968 = vmatprep.subr.mxu0 0.0
        %969 = vmatpush1.xpose.msra.mxu0 0.0
        %970 = vmatprep.subr.mxu0 0.0
        %971 = vmatpush1.xpose.msra.mxu0 0.0
        %972 = vmatprep.subr.mxu0 0.0
        %973 = vmatpush1.xpose.msra.mxu0 0.0
        %974 = vmatprep.subr.mxu0 0.0
        %975 = vmatpush1.xpose.msra.mxu0 0.0
        %976 = vmatprep.subr.mxu0 0.0
        %977 = vmatpush1.xpose.msra.mxu0 0.0
        %978 = vmatprep.mubr.f32.mxu0 0.0
        %979 = vmatmul.mubr.f32.gmra.mrb[0].mxu0 %v910
        %v980 = vpop.f32.mrb[0].mxu0
        %v981 = vadd.f32 %v742, %v980
        %v982 = vpop.f32.mrb[0].mxu0
        %983 = vdwg.mxu0
        %v984 = vsel %vm744, %v981, -inf
        %985 = vmax.xlane.f32.xlu0 %v984
        %v986 = vpop.xlane.xlu0 %985
        %v987 = vsub.f32 %v981, %v986
        %v988 = vmul.f32 %v987, 1.442695
        %v989 = vpow.pop %v988
        %v990 = vsel %vm744, %v989, 0.0
        %991 = vadd.xlane.f32.xlu0 %v990
        %v992 = vpop.xlane.xlu0 %991
        %v993 = vrcp.pop %v992
        %v994 = vmul.f32 %v989, %v993
        %s995 = scalar_lea.vmem %s484, 8 [#allocation14]
        %996 = vst.msk [vmem:[%s995] sm:$0xff] %vm744, %v994
        %998 = vrot.lane.b32.xlu0 %v733, 120
        %v999 = vpop.permute.xlu0 %998
        %v1002 = vsel %vm744, %v994, 0
        %1004 = vmatprep.subr.mxu0 0.0
        %1005 = vmatpush1.msra.mxu0 %v999
        %1006 = vmatprep.subr.mxu0 0.0
        %1007 = vmatpush1.msra.mxu0 0.0
        %1008 = vmatprep.subr.mxu0 0.0
        %1009 = vmatpush1.msra.mxu0 0.0
        %1010 = vmatprep.subr.mxu0 0.0
        %1011 = vmatpush1.msra.mxu0 0.0
        %1012 = vmatprep.subr.mxu0 0.0
        %1013 = vmatpush1.msra.mxu0 0.0
        %1014 = vmatprep.subr.mxu0 0.0
        %1015 = vmatpush1.msra.mxu0 0.0
        %1016 = vmatprep.subr.mxu0 0.0
        %1017 = vmatpush1.msra.mxu0 0.0
        %1018 = vmatprep.subr.mxu0 0.0
        %1019 = vmatpush1.msra.mxu0 0.0
        %1020 = vmatprep.subr.mxu0 0.0
        %1021 = vmatpush1.msra.mxu0 0.0
        %1022 = vmatprep.subr.mxu0 0.0
        %1023 = vmatpush1.msra.mxu0 0.0
        %1024 = vmatprep.subr.mxu0 0.0
        %1025 = vmatpush1.msra.mxu0 0.0
        %1026 = vmatprep.subr.mxu0 0.0
        %1027 = vmatpush1.msra.mxu0 0.0
        %1028 = vmatprep.subr.mxu0 0.0
        %1029 = vmatpush1.msra.mxu0 0.0
        %1030 = vmatprep.subr.mxu0 0.0
        %1031 = vmatpush1.msra.mxu0 0.0
        %1032 = vmatprep.subr.mxu0 0.0
        %1033 = vmatpush1.msra.mxu0 0.0
        %1034 = vmatprep.subr.mxu0 0.0
        %1035 = vmatpush1.msra.mxu0 0.0
        %1036 = vmatprep.subr.mxu0 0.0
        %1037 = vmatpush1.msra.mxu0 0.0
        %1038 = vmatprep.subr.mxu0 0.0
        %1039 = vmatpush1.msra.mxu0 0.0
        %1040 = vmatprep.subr.mxu0 0.0
        %1041 = vmatpush1.msra.mxu0 0.0
        %1042 = vmatprep.subr.mxu0 0.0
        %1043 = vmatpush1.msra.mxu0 0.0
        %1044 = vmatprep.subr.mxu0 0.0
        %1045 = vmatpush1.msra.mxu0 0.0
        %1046 = vmatprep.subr.mxu0 0.0
        %1047 = vmatpush1.msra.mxu0 0.0
        %1048 = vmatprep.subr.mxu0 0.0
        %1049 = vmatpush1.msra.mxu0 0.0
        %1050 = vmatprep.subr.mxu0 0.0
        %1051 = vmatpush1.msra.mxu0 0.0
        %1052 = vmatprep.subr.mxu0 0.0
        %1053 = vmatpush1.msra.mxu0 0.0
        %1054 = vmatprep.subr.mxu0 0.0
        %1055 = vmatpush1.msra.mxu0 0.0
        %1056 = vmatprep.subr.mxu0 0.0
        %1057 = vmatpush1.msra.mxu0 0.0
        %1058 = vmatprep.subr.mxu0 0.0
        %1059 = vmatpush1.msra.mxu0 0.0
        %1060 = vmatprep.subr.mxu0 0.0
        %1061 = vmatpush1.msra.mxu0 0.0
        %1062 = vmatprep.subr.mxu0 0.0
        %1063 = vmatpush1.msra.mxu0 0.0
        %1064 = vmatprep.subr.mxu0 0.0
        %1065 = vmatpush1.msra.mxu0 0.0
        %1066 = vmatprep.subr.mxu0 0.0
        %1067 = vmatpush1.msra.mxu0 0.0
        %1068 = vmatprep.mubr.f32.mxu0 0.0
        %1069 = vmatmul.mubr.f32.gmra.mrb[0].mxu0 %v1002
        %v1070 = vpop.f32.mrb[0].mxu0
        %v1071 = vadd.f32 0.0, %v1070
        %v1072 = vpop.f32.mrb[0].mxu0
        %1073 = vdwg.mxu0
        %1074 = vrot.lane.b32.xlu0 %v736, 112
        %v1075 = vpop.permute.xlu0 %1074
        %1076 = vrot.lane.b32.xlu0 %v652, 112
        %v1077 = vpop.permute.xlu0 %1076
        %v1078 = vsel %vm744, %v1075, 0
        %v1080 = vsel %vm744, %v1077, 0
        %1082 = vmatprep.subr.mxu0 0.0
        %1083 = vmatpush1.xpose.msra.mxu0 %v1080
        %1084 = vmatprep.subr.mxu0 0.0
        %1085 = vmatpush1.xpose.msra.mxu0 0.0
        %1086 = vmatprep.subr.mxu0 0.0
        %1087 = vmatpush1.xpose.msra.mxu0 0.0
        %1088 = vmatprep.subr.mxu0 0.0
        %1089 = vmatpush1.xpose.msra.mxu0 0.0
        %1090 = vmatprep.subr.mxu0 0.0
        %1091 = vmatpush1.xpose.msra.mxu0 0.0
        %1092 = vmatprep.subr.mxu0 0.0
        %1093 = vmatpush1.xpose.msra.mxu0 0.0
        %1094 = vmatprep.subr.mxu0 0.0
        %1095 = vmatpush1.xpose.msra.mxu0 0.0
        %1096 = vmatprep.subr.mxu0 0.0
        %1097 = vmatpush1.xpose.msra.mxu0 0.0
        %1098 = vmatprep.subr.mxu0 0.0
        %1099 = vmatpush1.xpose.msra.mxu0 0.0
        %1100 = vmatprep.subr.mxu0 0.0
        %1101 = vmatpush1.xpose.msra.mxu0 0.0
        %1102 = vmatprep.subr.mxu0 0.0
        %1103 = vmatpush1.xpose.msra.mxu0 0.0
        %1104 = vmatprep.subr.mxu0 0.0
        %1105 = vmatpush1.xpose.msra.mxu0 0.0
        %1106 = vmatprep.subr.mxu0 0.0
        %1107 = vmatpush1.xpose.msra.mxu0 0.0
        %1108 = vmatprep.subr.mxu0 0.0
        %1109 = vmatpush1.xpose.msra.mxu0 0.0
        %1110 = vmatprep.subr.mxu0 0.0
        %1111 = vmatpush1.xpose.msra.mxu0 0.0
        %1112 = vmatprep.subr.mxu0 0.0
        %1113 = vmatpush1.xpose.msra.mxu0 0.0
        %1114 = vmatprep.subr.mxu0 0.0
        %1115 = vmatpush1.xpose.msra.mxu0 0.0
        %1116 = vmatprep.subr.mxu0 0.0
        %1117 = vmatpush1.xpose.msra.mxu0 0.0
        %1118 = vmatprep.subr.mxu0 0.0
        %1119 = vmatpush1.xpose.msra.mxu0 0.0
        %1120 = vmatprep.subr.mxu0 0.0
        %1121 = vmatpush1.xpose.msra.mxu0 0.0
        %1122 = vmatprep.subr.mxu0 0.0
        %1123 = vmatpush1.xpose.msra.mxu0 0.0
        %1124 = vmatprep.subr.mxu0 0.0
        %1125 = vmatpush1.xpose.msra.mxu0 0.0
        %1126 = vmatprep.subr.mxu0 0.0
        %1127 = vmatpush1.xpose.msra.mxu0 0.0
        %1128 = vmatprep.subr.mxu0 0.0
        %1129 = vmatpush1.xpose.msra.mxu0 0.0
        %1130 = vmatprep.subr.mxu0 0.0
        %1131 = vmatpush1.xpose.msra.mxu0 0.0
        %1132 = vmatprep.subr.mxu0 0.0
        %1133 = vmatpush1.xpose.msra.mxu0 0.0
        %1134 = vmatprep.subr.mxu0 0.0
        %1135 = vmatpush1.xpose.msra.mxu0 0.0
        %1136 = vmatprep.subr.mxu0 0.0
        %1137 = vmatpush1.xpose.msra.mxu0 0.0
        %1138 = vmatprep.subr.mxu0 0.0
        %1139 = vmatpush1.xpose.msra.mxu0 0.0
        %1140 = vmatprep.subr.mxu0 0.0
        %1141 = vmatpush1.xpose.msra.mxu0 0.0
        %1142 = vmatprep.subr.mxu0 0.0
        %1143 = vmatpush1.xpose.msra.mxu0 0.0
        %1144 = vmatprep.subr.mxu0 0.0
        %1145 = vmatpush1.xpose.msra.mxu0 0.0
        %1146 = vmatprep.mubr.f32.mxu0 0.0
        %1147 = vmatmul.mubr.f32.gmra.mrb[0].mxu0 %v1078
        %v1148 = vpop.f32.mrb[0].mxu0
        %v1149 = vadd.f32 %v742, %v1148
        %v1150 = vpop.f32.mrb[0].mxu0
        %1151 = vdwg.mxu0
        %v1152 = vsel %vm744, %v1149, -inf
        %1153 = vmax.xlane.f32.xlu0 %v1152
        %v1154 = vpop.xlane.xlu0 %1153
        %v1155 = vsub.f32 %v1149, %v1154
        %v1156 = vmul.f32 %v1155, 1.442695
        %v1157 = vpow.pop %v1156
        %v1158 = vsel %vm744, %v1157, 0.0
        %1159 = vadd.xlane.f32.xlu0 %v1158
        %v1160 = vpop.xlane.xlu0 %1159
        %v1161 = vrcp.pop %v1160
        %v1162 = vmul.f32 %v1157, %v1161
        %s1163 = scalar_lea.vmem %s484, 16 [#allocation14]
        %1164 = vst.msk [vmem:[%s1163] sm:$0xff] %vm744, %v1162
        %1165 = vrot.lane.b32.xlu0 %v733, 112
        %v1166 = vpop.permute.xlu0 %1165
        %v1169 = vsel %vm744, %v1162, 0
        %1171 = vmatprep.subr.mxu0 0.0
        %1172 = vmatpush1.msra.mxu0 %v1166
        %1173 = vmatprep.subr.mxu0 0.0
        %1174 = vmatpush1.msra.mxu0 0.0
        %1175 = vmatprep.subr.mxu0 0.0
        %1176 = vmatpush1.msra.mxu0 0.0
        %1177 = vmatprep.subr.mxu0 0.0
        %1178 = vmatpush1.msra.mxu0 0.0
        %1179 = vmatprep.subr.mxu0 0.0
        %1180 = vmatpush1.msra.mxu0 0.0
        %1181 = vmatprep.subr.mxu0 0.0
        %1182 = vmatpush1.msra.mxu0 0.0
        %1183 = vmatprep.subr.mxu0 0.0
        %1184 = vmatpush1.msra.mxu0 0.0
        %1185 = vmatprep.subr.mxu0 0.0
        %1186 = vmatpush1.msra.mxu0 0.0
        %1187 = vmatprep.subr.mxu0 0.0
        %1188 = vmatpush1.msra.mxu0 0.0
        %1189 = vmatprep.subr.mxu0 0.0
        %1190 = vmatpush1.msra.mxu0 0.0
        %1191 = vmatprep.subr.mxu0 0.0
        %1192 = vmatpush1.msra.mxu0 0.0
        %1193 = vmatprep.subr.mxu0 0.0
        %1194 = vmatpush1.msra.mxu0 0.0
        %1195 = vmatprep.subr.mxu0 0.0
        %1196 = vmatpush1.msra.mxu0 0.0
        %1197 = vmatprep.subr.mxu0 0.0
        %1198 = vmatpush1.msra.mxu0 0.0
        %1199 = vmatprep.subr.mxu0 0.0
        %1200 = vmatpush1.msra.mxu0 0.0
        %1201 = vmatprep.subr.mxu0 0.0
        %1202 = vmatpush1.msra.mxu0 0.0
        %1203 = vmatprep.subr.mxu0 0.0
        %1204 = vmatpush1.msra.mxu0 0.0
        %1205 = vmatprep.subr.mxu0 0.0
        %1206 = vmatpush1.msra.mxu0 0.0
        %1207 = vmatprep.subr.mxu0 0.0
        %1208 = vmatpush1.msra.mxu0 0.0
        %1209 = vmatprep.subr.mxu0 0.0
        %1210 = vmatpush1.msra.mxu0 0.0
        %1211 = vmatprep.subr.mxu0 0.0
        %1212 = vmatpush1.msra.mxu0 0.0
        %1213 = vmatprep.subr.mxu0 0.0
        %1214 = vmatpush1.msra.mxu0 0.0
        %1215 = vmatprep.subr.mxu0 0.0
        %1216 = vmatpush1.msra.mxu0 0.0
        %1217 = vmatprep.subr.mxu0 0.0
        %1218 = vmatpush1.msra.mxu0 0.0
        %1219 = vmatprep.subr.mxu0 0.0
        %1220 = vmatpush1.msra.mxu0 0.0
        %1221 = vmatprep.subr.mxu0 0.0
        %1222 = vmatpush1.msra.mxu0 0.0
        %1223 = vmatprep.subr.mxu0 0.0
        %1224 = vmatpush1.msra.mxu0 0.0
        %1225 = vmatprep.subr.mxu0 0.0
        %1226 = vmatpush1.msra.mxu0 0.0
        %1227 = vmatprep.subr.mxu0 0.0
        %1228 = vmatpush1.msra.mxu0 0.0
        %1229 = vmatprep.subr.mxu0 0.0
        %1230 = vmatpush1.msra.mxu0 0.0
        %1231 = vmatprep.subr.mxu0 0.0
        %1232 = vmatpush1.msra.mxu0 0.0
        %1233 = vmatprep.subr.mxu0 0.0
        %1234 = vmatpush1.msra.mxu0 0.0
        %1235 = vmatprep.mubr.f32.mxu0 0.0
        %1236 = vmatmul.mubr.f32.gmra.mrb[0].mxu0 %v1169
        %v1237 = vpop.f32.mrb[0].mxu0
        %v1238 = vadd.f32 0.0, %v1237
        %v1239 = vpop.f32.mrb[0].mxu0
        %1240 = vdwg.mxu0
        %1241 = vrot.lane.b32.xlu0 %v736, 104
        %v1242 = vpop.permute.xlu0 %1241
        %1243 = vrot.lane.b32.xlu0 %v652, 104
        %v1244 = vpop.permute.xlu0 %1243
        %v1245 = vsel %vm744, %v1242, 0
        %v1247 = vsel %vm744, %v1244, 0
        %1249 = vmatprep.subr.mxu0 0.0
        %1250 = vmatpush1.xpose.msra.mxu0 %v1247
        %1251 = vmatprep.subr.mxu0 0.0
        %1252 = vmatpush1.xpose.msra.mxu0 0.0
        %1253 = vmatprep.subr.mxu0 0.0
        %1254 = vmatpush1.xpose.msra.mxu0 0.0
        %1255 = vmatprep.subr.mxu0 0.0
        %1256 = vmatpush1.xpose.msra.mxu0 0.0
        %1257 = vmatprep.subr.mxu0 0.0
        %1258 = vmatpush1.xpose.msra.mxu0 0.0
        %1259 = vmatprep.subr.mxu0 0.0
        %1260 = vmatpush1.xpose.msra.mxu0 0.0
        %1261 = vmatprep.subr.mxu0 0.0
        %1262 = vmatpush1.xpose.msra.mxu0 0.0
        %1263 = vmatprep.subr.mxu0 0.0
        %1264 = vmatpush1.xpose.msra.mxu0 0.0
        %1265 = vmatprep.subr.mxu0 0.0
        %1266 = vmatpush1.xpose.msra.mxu0 0.0
        %1267 = vmatprep.subr.mxu0 0.0
        %1268 = vmatpush1.xpose.msra.mxu0 0.0
        %1269 = vmatprep.subr.mxu0 0.0
        %1270 = vmatpush1.xpose.msra.mxu0 0.0
        %1271 = vmatprep.subr.mxu0 0.0
        %1272 = vmatpush1.xpose.msra.mxu0 0.0
        %1273 = vmatprep.subr.mxu0 0.0
        %1274 = vmatpush1.xpose.msra.mxu0 0.0
        %1275 = vmatprep.subr.mxu0 0.0
        %1276 = vmatpush1.xpose.msra.mxu0 0.0
        %1277 = vmatprep.subr.mxu0 0.0
        %1278 = vmatpush1.xpose.msra.mxu0 0.0
        %1279 = vmatprep.subr.mxu0 0.0
        %1280 = vmatpush1.xpose.msra.mxu0 0.0
        %1281 = vmatprep.subr.mxu0 0.0
        %1282 = vmatpush1.xpose.msra.mxu0 0.0
        %1283 = vmatprep.subr.mxu0 0.0
        %1284 = vmatpush1.xpose.msra.mxu0 0.0
        %1285 = vmatprep.subr.mxu0 0.0
        %1286 = vmatpush1.xpose.msra.mxu0 0.0
        %1287 = vmatprep.subr.mxu0 0.0
        %1288 = vmatpush1.xpose.msra.mxu0 0.0
        %1289 = vmatprep.subr.mxu0 0.0
        %1290 = vmatpush1.xpose.msra.mxu0 0.0
        %1291 = vmatprep.subr.mxu0 0.0
        %1292 = vmatpush1.xpose.msra.mxu0 0.0
        %1293 = vmatprep.subr.mxu0 0.0
        %1294 = vmatpush1.xpose.msra.mxu0 0.0
        %1295 = vmatprep.subr.mxu0 0.0
        %1296 = vmatpush1.xpose.msra.mxu0 0.0
        %1297 = vmatprep.subr.mxu0 0.0
        %1298 = vmatpush1.xpose.msra.mxu0 0.0
        %1299 = vmatprep.subr.mxu0 0.0
        %1300 = vmatpush1.xpose.msra.mxu0 0.0
        %1301 = vmatprep.subr.mxu0 0.0
        %1302 = vmatpush1.xpose.msra.mxu0 0.0
        %1303 = vmatprep.subr.mxu0 0.0
        %1304 = vmatpush1.xpose.msra.mxu0 0.0
        %1305 = vmatprep.subr.mxu0 0.0
        %1306 = vmatpush1.xpose.msra.mxu0 0.0
        %1307 = vmatprep.subr.mxu0 0.0
        %1308 = vmatpush1.xpose.msra.mxu0 0.0
        %1309 = vmatprep.subr.mxu0 0.0
        %1310 = vmatpush1.xpose.msra.mxu0 0.0
        %1311 = vmatprep.subr.mxu0 0.0
        %1312 = vmatpush1.xpose.msra.mxu0 0.0
        %1313 = vmatprep.mubr.f32.mxu0 0.0
        %1314 = vmatmul.mubr.f32.gmra.mrb[0].mxu0 %v1245
        %v1315 = vpop.f32.mrb[0].mxu0
        %v1316 = vadd.f32 %v742, %v1315
        %v1317 = vpop.f32.mrb[0].mxu0
        %1318 = vdwg.mxu0
        %v1319 = vsel %vm744, %v1316, -inf
        %1320 = vmax.xlane.f32.xlu0 %v1319
        %v1321 = vpop.xlane.xlu0 %1320
        %v1322 = vsub.f32 %v1316, %v1321
        %v1323 = vmul.f32 %v1322, 1.442695
        %v1324 = vpow.pop %v1323
        %v1325 = vsel %vm744, %v1324, 0.0
        %1326 = vadd.xlane.f32.xlu0 %v1325
        %v1327 = vpop.xlane.xlu0 %1326
        %v1328 = vrcp.pop %v1327
        %v1329 = vmul.f32 %v1324, %v1328
        %s1330 = scalar_lea.vmem %s484, 24 [#allocation14]
        %1331 = vst.msk [vmem:[%s1330] sm:$0xff] %vm744, %v1329
        %1332 = vrot.lane.b32.xlu0 %v733, 104
        %v1333 = vpop.permute.xlu0 %1332
        %v1336 = vsel %vm744, %v1329, 0
        %1338 = vmatprep.subr.mxu0 0.0
        %1339 = vmatpush1.msra.mxu0 %v1333
        %1340 = vmatprep.subr.mxu0 0.0
        %1341 = vmatpush1.msra.mxu0 0.0
        %1342 = vmatprep.subr.mxu0 0.0
        %1343 = vmatpush1.msra.mxu0 0.0
        %1344 = vmatprep.subr.mxu0 0.0
        %1345 = vmatpush1.msra.mxu0 0.0
        %1346 = vmatprep.subr.mxu0 0.0
        %1347 = vmatpush1.msra.mxu0 0.0
        %1348 = vmatprep.subr.mxu0 0.0
        %1349 = vmatpush1.msra.mxu0 0.0
        %1350 = vmatprep.subr.mxu0 0.0
        %1351 = vmatpush1.msra.mxu0 0.0
        %1352 = vmatprep.subr.mxu0 0.0
        %1353 = vmatpush1.msra.mxu0 0.0
        %1354 = vmatprep.subr.mxu0 0.0
        %1355 = vmatpush1.msra.mxu0 0.0
        %1356 = vmatprep.subr.mxu0 0.0
        %1357 = vmatpush1.msra.mxu0 0.0
        %1358 = vmatprep.subr.mxu0 0.0
        %1359 = vmatpush1.msra.mxu0 0.0
        %1360 = vmatprep.subr.mxu0 0.0
        %1361 = vmatpush1.msra.mxu0 0.0
        %1362 = vmatprep.subr.mxu0 0.0
        %1363 = vmatpush1.msra.mxu0 0.0
        %1364 = vmatprep.subr.mxu0 0.0
        %1365 = vmatpush1.msra.mxu0 0.0
        %1366 = vmatprep.subr.mxu0 0.0
        %1367 = vmatpush1.msra.mxu0 0.0
        %1368 = vmatprep.subr.mxu0 0.0
        %1369 = vmatpush1.msra.mxu0 0.0
        %1370 = vmatprep.subr.mxu0 0.0
        %1371 = vmatpush1.msra.mxu0 0.0
        %1372 = vmatprep.subr.mxu0 0.0
        %1373 = vmatpush1.msra.mxu0 0.0
        %1374 = vmatprep.subr.mxu0 0.0
        %1375 = vmatpush1.msra.mxu0 0.0
        %1376 = vmatprep.subr.mxu0 0.0
        %1377 = vmatpush1.msra.mxu0 0.0
        %1378 = vmatprep.subr.mxu0 0.0
        %1379 = vmatpush1.msra.mxu0 0.0
        %1380 = vmatprep.subr.mxu0 0.0
        %1381 = vmatpush1.msra.mxu0 0.0
        %1382 = vmatprep.subr.mxu0 0.0
        %1383 = vmatpush1.msra.mxu0 0.0
        %1384 = vmatprep.subr.mxu0 0.0
        %1385 = vmatpush1.msra.mxu0 0.0
        %1386 = vmatprep.subr.mxu0 0.0
        %1387 = vmatpush1.msra.mxu0 0.0
        %1388 = vmatprep.subr.mxu0 0.0
        %1389 = vmatpush1.msra.mxu0 0.0
        %1390 = vmatprep.subr.mxu0 0.0
        %1391 = vmatpush1.msra.mxu0 0.0
        %1392 = vmatprep.subr.mxu0 0.0
        %1393 = vmatpush1.msra.mxu0 0.0
        %1394 = vmatprep.subr.mxu0 0.0
        %1395 = vmatpush1.msra.mxu0 0.0
        %1396 = vmatprep.subr.mxu0 0.0
        %1397 = vmatpush1.msra.mxu0 0.0
        %1398 = vmatprep.subr.mxu0 0.0
        %1399 = vmatpush1.msra.mxu0 0.0
        %1400 = vmatprep.subr.mxu0 0.0
        %1401 = vmatpush1.msra.mxu0 0.0
        %1402 = vmatprep.mubr.f32.mxu0 0.0
        %1403 = vmatmul.mubr.f32.gmra.mrb[0].mxu0 %v1336
        %v1404 = vpop.f32.mrb[0].mxu0
        %v1405 = vadd.f32 0.0, %v1404
        %v1406 = vpop.f32.mrb[0].mxu0
        %1407 = vdwg.mxu0
        %1409 = vrot.lane.b32.xlu0 %v1071, 8
        %v1410 = vpop.permute.xlu0 %1409
        %1413 = vrot.lane.b32.xlu0 %v1238, 16
        %v1414 = vpop.permute.xlu0 %1413
        %1417 = vrot.lane.b32.xlu0 %v1405, 24
        %v1418 = vpop.permute.xlu0 %1417
        %v1420 = vsel %vm744, %v903, %v1410
        %vm1421 = vcmask 130048
        %v1422 = vsel %vm1421, %v1420, %v1414
        %vm1423 = vcmask 195584
        %v1424 = vsel %vm1423, %v1422, %v1418
        %1425 = vst.msk [vmem:[%s477] sm:$0xff] %vm500, %v1424
        %s1426 = sand.u32 %s231, 1
        %s1427 = scalar_lea.sflag [#allocation4], %s1426
        %s1428 = sand.u32 %s231, 1
        %s1429 = smul.addr %s1428, 8
        %s1430 = scalar_lea.vmem [#allocation13], %s1429
        %s1431 = sand.u32 %s257, 1
        %s1432 = scalar_lea.sflag [#allocation15], %s1431
        %s1433 = sand.u32 %s257, 1
        %s1434 = smul.addr %s1433, 32
        %s1435 = scalar_lea.vmem [#allocation14], %s1434
        // Predicated region
        $region77: #{tpu_custom_call.1} parent=51 // pred_check
          %p1436 = pneg %p241
        $region78: #{tpu_custom_call.1} parent=51 // pred_check_branch
          %1438 = sbr.rel (%p1436) target = $region80
        $region79: #{tpu_custom_call.1} parent=51 // pred_region
          %s1440 = ssub.s32 128, 128
          %1441 = vsyncadd %s1427, %s1440
          %s1442 = smul.addr %s35, 128
          %s1443 = scalar_lea.hbm %s8, %s1442
          %s1445 = sshll.u32 %s1430, 4
          %s1446 = int_to_ptr.vmem [resolvable:$true] %s1445
          %1448 = dma.vmem_to_hbm [thread:$0]  %s1446, 128, %s1443, %s1427
        $region80: #{tpu_custom_call.1} parent=51 // pred_fallthru
          _
        // Predicated region
        $region81: #{tpu_custom_call.1} parent=51 // pred_check
          %p1449 = pneg %p267
        $region82: #{tpu_custom_call.1} parent=51 // pred_check_branch
          %1451 = sbr.rel (%p1449) target = $region84
        $region83: #{tpu_custom_call.1} parent=51 // pred_region
          %s1453 = ssub.s32 512, 512
          %1454 = vsyncadd %s1432, %s1453
          %s1455 = smul.addr %s35, 4
          %s1456 = smul.addr %s1455, 128
          %s1457 = scalar_lea.hbm %s9, %s1456
          %s1458 = sshll.u32 %s1435, 4
          %s1459 = int_to_ptr.vmem [resolvable:$true] %s1458
          %1464 = dma.vmem_to_hbm [thread:$0]  %s1459, 512, %s1457, %s1432, 128, 128, 8
        $region84: #{tpu_custom_call.1} parent=51 // pred_fallthru
          _
      $region52: #{tpu_custom_call.1} parent=5 // pred_fallthru
        _
      %p1465 = scmp.le.s32.totalorder 2, %s30
      // Predicated region
      $region85: #{tpu_custom_call.1} parent=5 // pred_check
        %p1466 = pneg %p1465
      $region86: #{tpu_custom_call.1} parent=5 // pred_check_branch
        %1468 = sbr.rel (%p1466) target = $region88
      $region87: #{tpu_custom_call.1} parent=5 // pred_region
        %s1469 = ssub.s32 %s30, 2
        // Predicated region
        $region89: #{tpu_custom_call.1} parent=87 // pred_check
          %p1470 = pneg %p247
        $region90: #{tpu_custom_call.1} parent=87 // pred_check_branch
          %1472 = sbr.rel (%p1470) target = $region92
        $region91: #{tpu_custom_call.1} parent=87 // pred_region
          %s1473 = sand.u32 %s232, 1
          %s1474 = scalar_lea.sflag [#allocation4], %s1473
          %s1475 = sand.u32 %s232, 1
          %s1476 = smul.addr %s1475, 8
          %s1477 = scalar_lea.vmem [#allocation13], %s1476
          %1478 = dma.done %s1474, 128
        $region92: #{tpu_custom_call.1} parent=87 // pred_fallthru
          _
        // Predicated region
        $region93: #{tpu_custom_call.1} parent=87 // pred_check
          %p1479 = pneg %p273
        $region94: #{tpu_custom_call.1} parent=87 // pred_check_branch
          %1481 = sbr.rel (%p1479) target = $region96
        $region95: #{tpu_custom_call.1} parent=87 // pred_region
          %s1482 = sand.u32 %s258, 1
          %s1483 = scalar_lea.sflag [#allocation15], %s1482
          %s1484 = sand.u32 %s258, 1
          %s1485 = smul.addr %s1484, 32
          %s1486 = scalar_lea.vmem [#allocation14], %s1485
          %1487 = dma.done %s1483, 512
        $region96: #{tpu_custom_call.1} parent=87 // pred_fallthru
          _
      $region88: #{tpu_custom_call.1} parent=5 // pred_fallthru
        _
    $region6: #{tpu_custom_call.1} parent=1 // loop_footer
      %s34 = sadd.s32 1, %s30
    $region7: #{tpu_custom_call.1} parent=1 // loop_footer_branch
      %29 = sbr.rel target = $region3
    $region8: #{tpu_custom_call.1} parent=1 // loop_exit
      _
    %1488 = vsyncpa [#allocation3], 1
    %s1489 = scalar_lea.sflag [#allocation3], 1
    %1490 = vsyncpa %s1489, 1
    %1491 = vsyncpa [#allocation6], 1
    %s1492 = scalar_lea.sflag [#allocation6], 1
    %1493 = vsyncpa %s1492, 1
    %1494 = vsyncpa [#allocation9], 1
    %1495 = vsyncpa [#allocation12], 1
    %1496 = vsyncpa [#allocation4], 1
    %s1497 = scalar_lea.sflag [#allocation4], 1
    %1498 = vsyncpa %s1497, 1
    %1499 = vsyncpa [#allocation15], 1
    %s1500 = scalar_lea.sflag [#allocation15], 1
    %1501 = vsyncpa %s1500, 1

</llo_original>
